<compile_context>
chip_gen: v5e
topology: v5e:2x2
jax: 0.10.0
libtpu: 0.0.40
codegen_flags: <defaults>
</compile_context>

<pallas_src>
import functools
import math

import jax
import jax.numpy as jnp
from jax.experimental import pallas as pl
from jax.experimental.pallas import tpu as pltpu


def _round_up(n, m):
    return ((n + m - 1) // m) * m


def _pinn_kernel(n_linear, tm, widths, b_offsets,
                 xt_ref, lbub_ref, b_ref, *refs):
    """One grid step: tm batch points on the lane axis.

    refs = (w_0, ..., w_{n_linear-1}, out_ref, slab)
    slab[:, :tm] holds the activation h, slab[:, tm:] holds dh/dx, so every
    hidden layer is a single MXU matmul W @ [h | dh] with no concatenate.
    """
    w_refs = refs[:n_linear]
    out_ref = refs[n_linear]
    slab = refs[n_linear + 1]

    # 4 scalars from SMEM: [lb_x, lb_t, ub_x, ub_t]
    lbx = lbub_ref[0]
    lbt = lbub_ref[1]
    ubx = lbub_ref[2]
    ubt = lbub_ref[3]
    inv_rx = 2.0 / (ubx - lbx)        # also = d x_norm / d x (input tangent)
    inv_rt = 2.0 / (ubt - lbt)

    x = xt_ref[0:1, :]                # (1, tm)
    t = xt_ref[1:2, :]                # (1, tm)
    x_n = (x - lbx) * inv_rx - 1.0
    t_n = (t - lbt) * inv_rt - 1.0

    # First linear layer: K = 2 -> VPU broadcast (an MXU matmul with K=2 would
    # waste the systolic array).
    h1 = widths[1]
    w1 = w_refs[0][...]                                # (H1, 2)  (out, in)
    b1 = b_ref[b_offsets[0]:b_offsets[0] + h1, :]      # (H1, 1)
    z = w1[:, 0:1] * x_n + w1[:, 1:2] * t_n + b1       # (H1, tm)
    dz_col = inv_rx * w1[:, 0:1]                       # (H1, 1) tangent column

    if n_linear == 1:
        out_ref[:, :tm] = z
        out_ref[:, tm:] = jnp.broadcast_to(dz_col, z.shape)
        return

    h = jnp.tanh(z)
    slab[0:h1, 0:tm] = h
    slab[0:h1, tm:] = dz_col * (1.0 - h * h)

    for li in range(1, n_linear):
        h_in = widths[li]
        h_out = widths[li + 1]
        w = w_refs[li][...]                                   # (H_out, H_in)
        b = b_ref[b_offsets[li]:b_offsets[li] + h_out, :]     # (H_out, 1)
        zd = jnp.dot(w, slab[0:h_in, :],
                     preferred_element_type=jnp.float32)      # (H_out, 2*tm)
        if li < n_linear - 1:
            h = jnp.tanh(zd[:, :tm] + b)
            slab[0:h_out, 0:tm] = h
            slab[0:h_out, tm:] = zd[:, tm:] * (1.0 - h * h)
        else:
            # Single lane-dense full-block store: values in lanes [0, tm),
            # tangents in [tm, 2*tm); bias applies only to the value half.
            lane = jax.lax.broadcasted_iota(jnp.int32, (1, 2 * tm), 1)
            val_mask = (lane < tm).astype(jnp.float32)
            out_ref[...] = zd + b * val_mask


def pinn_forward(x, t, params, lb, ub, *, tm_max=4096):
    """Pallas-backed forward. Returns (u, v, u_x, v_x), each (N, 1) float32."""
    N = x.shape[0]
    n_linear = len(params)
    widths = tuple([params[0][0].shape[1]] + [w.shape[0] for (w, _) in params])
    n_out = widths[-1]

    # Big tiles amortize per-step grid overhead; keep >=2 grid steps when N
    # allows so both v7x TensorCores get work under dimension_semantics.
    tm = max(128, min(tm_max, _round_up(pl.cdiv(N, 2), 128)))
    n_pad = _round_up(N, tm)
    pad = n_pad - N

    xt = jnp.concatenate([x.astype(jnp.float32).reshape(1, N),
                          t.astype(jnp.float32).reshape(1, N)], axis=0)
    xt = jnp.pad(xt, ((0, 0), (0, pad)))                          # (2, n_pad)
    lbub = jnp.concatenate([jnp.asarray(lb, jnp.float32).reshape(-1),
                            jnp.asarray(ub, jnp.float32).reshape(-1)])  # (4,)

    # Pack all biases into one grid-invariant column (8-aligned row offsets).
    b_offsets, b_chunks, off = [], [], 0
    for (w, b) in params:
        hh = w.shape[0]
        b_offsets.append(off)
        hp = _round_up(hh, 8)
        b_chunks.append(jnp.pad(b.astype(jnp.float32).reshape(-1, 1),
                                ((0, hp - hh), (0, 0))))
        off += hp
    b_all = jnp.concatenate(b_chunks, axis=0)                     # (off, 1)

    weights = [w.astype(jnp.float32) for (w, _) in params]        # (out, in)

    hidden = widths[1:-1]
    h_slab = _round_up(max(hidden), 8) if hidden else 8

    in_specs = [
        pl.BlockSpec((2, tm), lambda i: (0, i)),                  # xt rows
        pl.BlockSpec(memory_space=pltpu.MemorySpace.SMEM),        # lb/ub
        pl.BlockSpec(b_all.shape, lambda i: (0, 0)),              # biases
    ]
    for w in weights:
        in_specs.append(pl.BlockSpec(w.shape, lambda i: (0, 0)))

    out = pl.pallas_call(
        functools.partial(_pinn_kernel, n_linear, tm, widths, tuple(b_offsets)),
        out_shape=jax.ShapeDtypeStruct((n_out, 2 * n_pad), jnp.float32),
        grid_spec=pltpu.PrefetchScalarGridSpec(
            num_scalar_prefetch=0,
            grid=(n_pad // tm,),
            in_specs=in_specs,
            out_specs=pl.BlockSpec((n_out, 2 * tm), lambda i: (0, i)),
            scratch_shapes=[pltpu.VMEM((h_slab, 2 * tm), jnp.float32)],
        ),
        compiler_params=pltpu.CompilerParams(
            dimension_semantics=("parallel",)),
    )(xt, lbub, b_all, *weights)

    # Un-interleave fused [values | tangents] lane blocks, drop padding.
    nb = n_pad // tm
    out = out.reshape(n_out, nb, 2, tm)
    vals = out[:, :, 0, :].reshape(n_out, n_pad)[:, :N]
    tans = out[:, :, 1, :].reshape(n_out, n_pad)[:, :N]
    return vals[0:1].T, vals[1:2].T, tans[0:1].T, tans[1:2].T


def init_params(layers, key):
    """Xavier-uniform init; weights stored in PyTorch (out, in) layout."""
    params = []
    keys = jax.random.split(key, len(layers) - 1)
    for i in range(len(layers) - 1):
        fan_in, fan_out = layers[i], layers[i + 1]
        bound = math.sqrt(6.0 / (fan_in + fan_out))
        w = jax.random.uniform(keys[i], (fan_out, fan_in), jnp.float32,
                               -bound, bound)
        b = jax.random.uniform(jax.random.fold_in(keys[i], 1),
                               (fan_out,), jnp.float32, -0.01, 0.01)
        params.append((w, b))
    return params


def ref_forward(x, t, params, lb, ub):
    """Pure-JAX reference matching the PyTorch module's semantics."""
    def net(xx, tt):
        X = jnp.concatenate([xx, tt], axis=1)
        X = 2.0 * (X - lb) / (ub - lb) - 1.0
        h = X
        for i, (w, b) in enumerate(params):
            h = h @ w.T + b.reshape(1, -1)            # nn.Linear: x @ W.T + b
            if i < len(params) - 1:
                h = jnp.tanh(h)
        return h

    uv = net(x, t)
    # torch.autograd.grad(u, x, ones_like(u)) == JVP w.r.t. x with tangent 1,
    # since each row of u/v depends only on the same row of x.
    _, duv = jax.jvp(lambda xx: net(xx, t), (x,), (jnp.ones_like(x),))
    return uv[:, 0:1], uv[:, 1:2], duv[:, 0:1], duv[:, 1:2]


if __name__ == "__main__":
    key = jax.random.PRNGKey(0)
    k_x, k_t, k_p = jax.random.split(key, 3)

    layers = [2, 32, 32, 32, 2]                 # small PINN: 2 -> ... -> (u, v)
    lb = jnp.array([-5.0, 0.0], jnp.float32)    # lower bounds of (x, t) domain
    ub = jnp.array([5.0, math.pi / 2], jnp.float32)

    N = 1024                                    # -> 2 grid steps (tm=512)
    x = jax.random.uniform(k_x, (N, 1), jnp.float32, -5.0, 5.0)
    t = jax.random.uniform(k_t, (N, 1), jnp.float32, 0.0, math.pi / 2)
    params = init_params(layers, k_p)

    u, v, ux, vx = pinn_forward(x, t, params, lb, ub)
    jax.block_until_ready((u, v, ux, vx))

    u_r, v_r, ux_r, vx_r = ref_forward(x, t, params, lb, ub)
    for got, want in ((u, u_r), (v, v_r), (ux, ux_r), (vx, vx_r)):
        assert got.shape == want.shape
        err = float(jnp.max(jnp.abs(got - want)))
        assert jnp.allclose(got, want, atol=5e-5, rtol=5e-5), err

    print("KERNEL_OK")
</pallas_src>

<mosaic_0001>
module attributes {stable_mosaic.version = 11 : i64} {
  func.func @_pinn_kernel(%arg0: i32, %arg1: memref<2x512xf32, #tpu.memory_space<vmem>>, %arg2: memref<4xf32, #tpu.memory_space<smem>>, %arg3: memref<104x1xf32, #tpu.memory_space<vmem>>, %arg4: memref<32x2xf32, #tpu.memory_space<vmem>>, %arg5: memref<32x32xf32, #tpu.memory_space<vmem>>, %arg6: memref<32x32xf32, #tpu.memory_space<vmem>>, %arg7: memref<2x32xf32, #tpu.memory_space<vmem>>, %arg8: memref<2x1024xf32, #tpu.memory_space<vmem>>, %arg9: memref<32x1024xf32, #tpu.memory_space<vmem>>) attributes {dimension_semantics = [#tpu.dimension_semantics<parallel>], iteration_bounds = array<i64: 2>, scalar_prefetch = 0 : i64, scratch_operands = 1 : i64, tpu.core_type = #tpu.core_type<tc>, window_params = [{transform_indices = @transform_0, window_bounds = array<i64: 2, 512>}, {transform_indices = @transform_1, window_bounds = array<i64: 4>}, {pipeline_mode = #tpu.pipeline_mode<synchronous>, transform_indices = @transform_2, window_bounds = array<i64: 104, 1>}, {pipeline_mode = #tpu.pipeline_mode<synchronous>, transform_indices = @transform_3, window_bounds = array<i64: 32, 2>}, {pipeline_mode = #tpu.pipeline_mode<synchronous>, transform_indices = @transform_4, window_bounds = array<i64: 32, 32>}, {pipeline_mode = #tpu.pipeline_mode<synchronous>, transform_indices = @transform_5, window_bounds = array<i64: 32, 32>}, {pipeline_mode = #tpu.pipeline_mode<synchronous>, transform_indices = @transform_6, window_bounds = array<i64: 2, 32>}, {transform_indices = @transform_7, window_bounds = array<i64: 2, 1024>}]} {
    %c0 = arith.constant 0 : index
    %0 = memref.load %arg2[%c0] : memref<4xf32, #tpu.memory_space<smem>>
    %c1 = arith.constant 1 : index
    %1 = memref.load %arg2[%c1] : memref<4xf32, #tpu.memory_space<smem>>
    %c2 = arith.constant 2 : index
    %2 = memref.load %arg2[%c2] : memref<4xf32, #tpu.memory_space<smem>>
    %c3 = arith.constant 3 : index
    %3 = memref.load %arg2[%c3] : memref<4xf32, #tpu.memory_space<smem>>
    %4 = arith.subf %2, %0 : f32
    %cst = arith.constant 2.000000e+00 : f32
    %5 = arith.divf %cst, %4 : f32
    %6 = arith.subf %3, %1 : f32
    %cst_0 = arith.constant 2.000000e+00 : f32
    %7 = arith.divf %cst_0, %6 : f32
    %c0_1 = arith.constant 0 : index
    %c0_2 = arith.constant 0 : index
    %8 = vector.load %arg1[%c0_1, %c0_2] : memref<2x512xf32, #tpu.memory_space<vmem>>, vector<1x512xf32>
    %c1_3 = arith.constant 1 : index
    %c0_4 = arith.constant 0 : index
    %9 = vector.load %arg1[%c1_3, %c0_4] : memref<2x512xf32, #tpu.memory_space<vmem>>, vector<1x512xf32>
    %10 = vector.broadcast %0 : f32 to vector<1x512xf32>
    %11 = arith.subf %8, %10 : vector<1x512xf32>
    %12 = vector.broadcast %5 : f32 to vector<1x512xf32>
    %13 = arith.mulf %11, %12 : vector<1x512xf32>
    %cst_5 = arith.constant 1.000000e+00 : f32
    %14 = vector.broadcast %cst_5 : f32 to vector<1x512xf32>
    %15 = arith.subf %13, %14 : vector<1x512xf32>
    %16 = vector.broadcast %1 : f32 to vector<1x512xf32>
    %17 = arith.subf %9, %16 : vector<1x512xf32>
    %18 = vector.broadcast %7 : f32 to vector<1x512xf32>
    %19 = arith.mulf %17, %18 : vector<1x512xf32>
    %cst_6 = arith.constant 1.000000e+00 : f32
    %20 = vector.broadcast %cst_6 : f32 to vector<1x512xf32>
    %21 = arith.subf %19, %20 : vector<1x512xf32>
    %c0_7 = arith.constant 0 : index
    %c0_8 = arith.constant 0 : index
    %22 = vector.load %arg4[%c0_7, %c0_8] : memref<32x2xf32, #tpu.memory_space<vmem>>, vector<32x2xf32>
    %c0_9 = arith.constant 0 : index
    %c0_10 = arith.constant 0 : index
    %23 = vector.load %arg3[%c0_9, %c0_10] : memref<104x1xf32, #tpu.memory_space<vmem>>, vector<32x1xf32>
    %24 = vector.extract_strided_slice %22 {offsets = [0, 0], sizes = [32, 1], strides = [1, 1]} : vector<32x2xf32> to vector<32x1xf32>
    %25 = vector.broadcast %24 : vector<32x1xf32> to vector<32x512xf32>
    %26 = vector.broadcast %15 : vector<1x512xf32> to vector<32x512xf32>
    %27 = arith.mulf %25, %26 : vector<32x512xf32>
    %28 = vector.extract_strided_slice %22 {offsets = [0, 1], sizes = [32, 1], strides = [1, 1]} : vector<32x2xf32> to vector<32x1xf32>
    %29 = vector.broadcast %28 : vector<32x1xf32> to vector<32x512xf32>
    %30 = vector.broadcast %21 : vector<1x512xf32> to vector<32x512xf32>
    %31 = arith.mulf %29, %30 : vector<32x512xf32>
    %32 = arith.addf %27, %31 : vector<32x512xf32>
    %33 = vector.broadcast %23 : vector<32x1xf32> to vector<32x512xf32>
    %34 = arith.addf %32, %33 : vector<32x512xf32>
    %35 = vector.extract_strided_slice %22 {offsets = [0, 0], sizes = [32, 1], strides = [1, 1]} : vector<32x2xf32> to vector<32x1xf32>
    %36 = vector.broadcast %5 : f32 to vector<32x1xf32>
    %37 = arith.mulf %36, %35 : vector<32x1xf32>
    %38 = math.tanh %34 : vector<32x512xf32>
    %c0_11 = arith.constant 0 : index
    %c0_12 = arith.constant 0 : index
    %39 = vector.load %arg9[%c0_11, %c0_12] : memref<32x1024xf32, #tpu.memory_space<vmem>>, vector<32x512xf32>
    tpu.vector_store %arg9[%c0_11, %c0_12], %38 {strides = array<i32>} : memref<32x1024xf32, #tpu.memory_space<vmem>>, vector<32x512xf32>,
    %40 = arith.mulf %38, %38 : vector<32x512xf32>
    %cst_13 = arith.constant 1.000000e+00 : f32
    %41 = vector.broadcast %cst_13 : f32 to vector<32x512xf32>
    %42 = arith.subf %41, %40 : vector<32x512xf32>
    %43 = vector.broadcast %37 : vector<32x1xf32> to vector<32x512xf32>
    %44 = arith.mulf %43, %42 : vector<32x512xf32>
    %c0_14 = arith.constant 0 : index
    %c512 = arith.constant 512 : index
    %45 = vector.load %arg9[%c0_14, %c512] : memref<32x1024xf32, #tpu.memory_space<vmem>>, vector<32x512xf32>
    tpu.vector_store %arg9[%c0_14, %c512], %44 {strides = array<i32>} : memref<32x1024xf32, #tpu.memory_space<vmem>>, vector<32x512xf32>,
    %c0_15 = arith.constant 0 : index
    %c0_16 = arith.constant 0 : index
    %46 = vector.load %arg5[%c0_15, %c0_16] : memref<32x32xf32, #tpu.memory_space<vmem>>, vector<32x32xf32>
    %c32 = arith.constant 32 : index
    %c0_17 = arith.constant 0 : index
    %47 = vector.load %arg3[%c32, %c0_17] : memref<104x1xf32, #tpu.memory_space<vmem>>, vector<32x1xf32>
    %c0_18 = arith.constant 0 : index
    %c0_19 = arith.constant 0 : index
    %48 = vector.load %arg9[%c0_18, %c0_19] : memref<32x1024xf32, #tpu.memory_space<vmem>>, vector<32x1024xf32>
    %cst_20 = arith.constant dense<0.000000e+00> : vector<32x1024xf32>
    %49 = tpu.matmul %46, %48, %cst_20 {dimension_numbers = #tpu.dot_dimension_numbers<[1], [0], [0], [1], [0, 0, 1, 1], [], []>} : vector<32x32xf32>, vector<32x1024xf32>, vector<32x1024xf32> -> vector<32x1024xf32>
    %50 = vector.extract_strided_slice %49 {offsets = [0, 0], sizes = [32, 512], strides = [1, 1]} : vector<32x1024xf32> to vector<32x512xf32>
    %51 = vector.broadcast %47 : vector<32x1xf32> to vector<32x512xf32>
    %52 = arith.addf %50, %51 : vector<32x512xf32>
    %53 = math.tanh %52 : vector<32x512xf32>
    %c0_21 = arith.constant 0 : index
    %c0_22 = arith.constant 0 : index
    %54 = vector.load %arg9[%c0_21, %c0_22] : memref<32x1024xf32, #tpu.memory_space<vmem>>, vector<32x512xf32>
    tpu.vector_store %arg9[%c0_21, %c0_22], %53 {strides = array<i32>} : memref<32x1024xf32, #tpu.memory_space<vmem>>, vector<32x512xf32>,
    %55 = vector.extract_strided_slice %49 {offsets = [0, 512], sizes = [32, 512], strides = [1, 1]} : vector<32x1024xf32> to vector<32x512xf32>
    %56 = arith.mulf %53, %53 : vector<32x512xf32>
    %cst_23 = arith.constant 1.000000e+00 : f32
    %57 = vector.broadcast %cst_23 : f32 to vector<32x512xf32>
    %58 = arith.subf %57, %56 : vector<32x512xf32>
    %59 = arith.mulf %55, %58 : vector<32x512xf32>
    %c0_24 = arith.constant 0 : index
    %c512_25 = arith.constant 512 : index
    %60 = vector.load %arg9[%c0_24, %c512_25] : memref<32x1024xf32, #tpu.memory_space<vmem>>, vector<32x512xf32>
    tpu.vector_store %arg9[%c0_24, %c512_25], %59 {strides = array<i32>} : memref<32x1024xf32, #tpu.memory_space<vmem>>, vector<32x512xf32>,
    %c0_26 = arith.constant 0 : index
    %c0_27 = arith.constant 0 : index
    %61 = vector.load %arg6[%c0_26, %c0_27] : memref<32x32xf32, #tpu.memory_space<vmem>>, vector<32x32xf32>
    %c64 = arith.constant 64 : index
    %c0_28 = arith.constant 0 : index
    %62 = vector.load %arg3[%c64, %c0_28] : memref<104x1xf32, #tpu.memory_space<vmem>>, vector<32x1xf32>
    %c0_29 = arith.constant 0 : index
    %c0_30 = arith.constant 0 : index
    %63 = vector.load %arg9[%c0_29, %c0_30] : memref<32x1024xf32, #tpu.memory_space<vmem>>, vector<32x1024xf32>
    %cst_31 = arith.constant dense<0.000000e+00> : vector<32x1024xf32>
    %64 = tpu.matmul %61, %63, %cst_31 {dimension_numbers = #tpu.dot_dimension_numbers<[1], [0], [0], [1], [0, 0, 1, 1], [], []>} : vector<32x32xf32>, vector<32x1024xf32>, vector<32x1024xf32> -> vector<32x1024xf32>
    %65 = vector.extract_strided_slice %64 {offsets = [0, 0], sizes = [32, 512], strides = [1, 1]} : vector<32x1024xf32> to vector<32x512xf32>
    %66 = vector.broadcast %62 : vector<32x1xf32> to vector<32x512xf32>
    %67 = arith.addf %65, %66 : vector<32x512xf32>
    %68 = math.tanh %67 : vector<32x512xf32>
    %c0_32 = arith.constant 0 : index
    %c0_33 = arith.constant 0 : index
    %69 = vector.load %arg9[%c0_32, %c0_33] : memref<32x1024xf32, #tpu.memory_space<vmem>>, vector<32x512xf32>
    tpu.vector_store %arg9[%c0_32, %c0_33], %68 {strides = array<i32>} : memref<32x1024xf32, #tpu.memory_space<vmem>>, vector<32x512xf32>,
    %70 = vector.extract_strided_slice %64 {offsets = [0, 512], sizes = [32, 512], strides = [1, 1]} : vector<32x1024xf32> to vector<32x512xf32>
    %71 = arith.mulf %68, %68 : vector<32x512xf32>
    %cst_34 = arith.constant 1.000000e+00 : f32
    %72 = vector.broadcast %cst_34 : f32 to vector<32x512xf32>
    %73 = arith.subf %72, %71 : vector<32x512xf32>
    %74 = arith.mulf %70, %73 : vector<32x512xf32>
    %c0_35 = arith.constant 0 : index
    %c512_36 = arith.constant 512 : index
    %75 = vector.load %arg9[%c0_35, %c512_36] : memref<32x1024xf32, #tpu.memory_space<vmem>>, vector<32x512xf32>
    tpu.vector_store %arg9[%c0_35, %c512_36], %74 {strides = array<i32>} : memref<32x1024xf32, #tpu.memory_space<vmem>>, vector<32x512xf32>,
    %c0_37 = arith.constant 0 : index
    %c0_38 = arith.constant 0 : index
    %76 = vector.load %arg7[%c0_37, %c0_38] : memref<2x32xf32, #tpu.memory_space<vmem>>, vector<2x32xf32>
    %c96 = arith.constant 96 : index
    %c0_39 = arith.constant 0 : index
    %77 = vector.load %arg3[%c96, %c0_39] : memref<104x1xf32, #tpu.memory_space<vmem>>, vector<2x1xf32>
    %c0_40 = arith.constant 0 : index
    %c0_41 = arith.constant 0 : index
    %78 = vector.load %arg9[%c0_40, %c0_41] : memref<32x1024xf32, #tpu.memory_space<vmem>>, vector<32x1024xf32>
    %cst_42 = arith.constant dense<0.000000e+00> : vector<2x1024xf32>
    %79 = tpu.matmul %76, %78, %cst_42 {dimension_numbers = #tpu.dot_dimension_numbers<[1], [0], [0], [1], [0, 0, 1, 1], [], []>} : vector<2x32xf32>, vector<32x1024xf32>, vector<2x1024xf32> -> vector<2x1024xf32>
    %80 = tpu.iota {dimensions = array<i32: 1>} : vector<1x1024xi32>
    %c512_i32 = arith.constant 512 : i32
    %81 = vector.broadcast %c512_i32 : i32 to vector<1x1024xi32>
    %82 = arith.cmpi slt, %80, %81 : vector<1x1024xi32>
    %83 = arith.extui %82 : vector<1x1024xi1> to vector<1x1024xi32>
    %84 = arith.sitofp %83 : vector<1x1024xi32> to vector<1x1024xf32>
    %85 = vector.broadcast %77 : vector<2x1xf32> to vector<2x1024xf32>
    %86 = vector.broadcast %84 : vector<1x1024xf32> to vector<2x1024xf32>
    %87 = arith.mulf %85, %86 : vector<2x1024xf32>
    %88 = arith.addf %79, %87 : vector<2x1024xf32>
    %c0_43 = arith.constant 0 : index
    %c0_44 = arith.constant 0 : index
    %89 = vector.load %arg8[%c0_43, %c0_44] : memref<2x1024xf32, #tpu.memory_space<vmem>>, vector<2x1024xf32>
    tpu.vector_store %arg8[%c0_43, %c0_44], %88 {strides = array<i32>} : memref<2x1024xf32, #tpu.memory_space<vmem>>, vector<2x1024xf32>,
    return
  }
  func.func @transform_0(%arg0: i32) -> (i32, i32) {
    %c0_i32 = arith.constant 0 : i32
    %c0_i32_0 = arith.constant 0 : i32
    return %c0_i32, %arg0 : i32, i32
  }
  func.func @transform_1(%arg0: i32) -> i32 {
    %c0_i32 = arith.constant 0 : i32
    %c0_i32_0 = arith.constant 0 : i32
    return %c0_i32 : i32
  }
  func.func @transform_2(%arg0: i32) -> (i32, i32) {
    %c0_i32 = arith.constant 0 : i32
    %c0_i32_0 = arith.constant 0 : i32
    %c0_i32_1 = arith.constant 0 : i32
    return %c0_i32, %c0_i32_0 : i32, i32
  }
  func.func @transform_3(%arg0: i32) -> (i32, i32) {
    %c0_i32 = arith.constant 0 : i32
    %c0_i32_0 = arith.constant 0 : i32
    %c0_i32_1 = arith.constant 0 : i32
    return %c0_i32, %c0_i32_0 : i32, i32
  }
  func.func @transform_4(%arg0: i32) -> (i32, i32) {
    %c0_i32 = arith.constant 0 : i32
    %c0_i32_0 = arith.constant 0 : i32
    %c0_i32_1 = arith.constant 0 : i32
    return %c0_i32, %c0_i32_0 : i32, i32
  }
  func.func @transform_5(%arg0: i32) -> (i32, i32) {
    %c0_i32 = arith.constant 0 : i32
    %c0_i32_0 = arith.constant 0 : i32
    %c0_i32_1 = arith.constant 0 : i32
    return %c0_i32, %c0_i32_0 : i32, i32
  }
  func.func @transform_6(%arg0: i32) -> (i32, i32) {
    %c0_i32 = arith.constant 0 : i32
    %c0_i32_0 = arith.constant 0 : i32
    %c0_i32_1 = arith.constant 0 : i32
    return %c0_i32, %c0_i32_0 : i32, i32
  }
  func.func @transform_7(%arg0: i32) -> (i32, i32) {
    %c0_i32 = arith.constant 0 : i32
    %c0_i32_0 = arith.constant 0 : i32
    return %c0_i32, %arg0 : i32, i32
  }
}

</mosaic_0001>

<llo_original>
// kernel: tpu_custom_call.1
$region0: #{tpu_custom_call.1}
  #allocation0 [shape = 'u32[]', space=smem, size = 0x4, offset = 0x4, fixed_abs, tag = 'smem constant byte address 0x4 - core index']
  #allocation1 [shape = 'u32[72,128]{1,0:T(1,128)}', space=vmem, size = 0x9000, scoped, tag = 'internal scratch']
  #allocation2 [shape = 'f32[32,1024]{1,0:T(8,128)}', space=vmem, size = 0x20000, scoped, tag = 'scratch operand']
  %s0 = inlined_call_operand.vmem [shape: f32[2,1024], index: 0, kind: input, shape index: {}]
  %s1 = inlined_call_operand.vmem [shape: f32[4], index: 1, kind: input, shape index: {}]
  %s2 = inlined_call_operand.vmem [shape: f32[104,1], index: 2, kind: input, shape index: {}]
  %s3 = inlined_call_operand.vmem [shape: f32[32,2], index: 3, kind: input, shape index: {}]
  %s4 = inlined_call_operand.vmem [shape: f32[32,32], index: 4, kind: input, shape index: {}]
  %s5 = inlined_call_operand.vmem [shape: f32[32,32], index: 5, kind: input, shape index: {}]
  %s6 = inlined_call_operand.vmem [shape: f32[2,32], index: 6, kind: input, shape index: {}]
  %s7 = inlined_call_operand.hbm [shape: f32[2,2048], index: 7, kind: output, shape index: {}]
  %s8 = sld [smem:[#allocation0]]
  $region65: #{tpu_custom_call.1} parent=0
    _
  %s10 = ssub.s32 1, %s8
  %s11 = scalar_select 0, %s10, %s8
  $region1: #{tpu_custom_call.1} parent=0
    #allocation3 [shape = 'u8[512]{0}', space=smem, size = 0x200, scoped, tag = 'input window, operand 1, single buffered']
    #allocation4 [shape = 's32[2]{0}', space=sflag, size = 0x8, scoped, tag = 'scoped memory for tpu_custom_call.1']
    #allocation5 [shape = 's32[2]{0}', space=sflag, size = 0x8, scoped, tag = 'scoped memory for tpu_custom_call.1']
    #allocation6 [shape = 'u8[16384]{0}', space=vmem, size = 0x4000, scoped, tag = 'output window, operand 0']
    %12 = vsyncpa [#allocation5], 0
    %13 = vsyncpa [#allocation4], 0
    %s14 = scalar_lea.sflag [#allocation4], 1
    %15 = vsyncpa %s14, 0
    loop: start=0, step=1, limit=4
    $region2: #{tpu_custom_call.1} parent=1 // loop_pre_header
      _
    $region3: #{tpu_custom_call.1} parent=1 // loop_header
      %s17 = sphi 0, %s21
      %p18 = scmp.ge.s32.totalorder %s17, 4
      %s27 = sphi 0, %s29
      %s30 = sphi 0, %s27
      %s31 = sphi 0, %s30
      %s47 = sphi 0, %s31
      %s51 = sphi 0, %s51
      %s53 = sphi 0, %s51
      %s54 = sphi 0, %s53
      %s68 = sphi 0, %s54
      %s72 = sphi 0, %s72
      %s74 = sphi 0, %s72
      %s75 = sphi 0, %s74
      %s89 = sphi 0, %s75
      %s93 = sphi 0, %s93
      %s95 = sphi 0, %s93
      %s96 = sphi 0, %s95
      %s110 = sphi 0, %s96
      %s114 = sphi 0, %s114
      %s116 = sphi 0, %s114
      %s117 = sphi 0, %s116
      %s131 = sphi 0, %s117
      %s135 = sphi 0, %s135
      %s137 = sphi 0, %s135
      %s138 = sphi 0, %s137
      %s152 = sphi 0, %s138
      %s156 = sphi 0, %s156
      %s158 = sphi 0, %s156
      %s159 = sphi 0, %s158
      %s173 = sphi 0, %s159
      %s179 = sphi 0, %s181
      %s182 = sphi 0, %s179
      %s183 = sphi 0, %s182
      %s199 = sphi 0, %s183
    $region4: #{tpu_custom_call.1} parent=1 // loop_header_branch
      %20 = sbr.rel (%p18) target = $region8
    $region5: #{tpu_custom_call.1} parent=1 // loop_body
      %s22 = ssub.s32 %s17, 1
      %s23 = ssub.s32 %s17, 2
      %s24 = sadd.s32 %s17, 1
      %s25 = ssub.s32 %s17, %s24
      %p26 = scmp.eq.s32.totalorder %s25, 0
      %s28 = sadd.s32 %s27, 1
      %s29 = scalar_select %p26, %s27, %s28
      %p32 = pneg %p26
      %p33 = scmp.eq.s32.totalorder %s17, 1
      %p34 = por %p32, %p33
      %p35 = scmp.ne.s32.totalorder %s27, %s30
      %p36 = scmp.eq.s32.totalorder %s17, 0
      %p37 = por %p35, %p36
      %p38 = scmp.ne.s32.totalorder %s27, %s30
      %p39 = scmp.eq.s32.totalorder %s22, 1
      %p40 = por %p38, %p39
      %p41 = scmp.ne.s32.totalorder %s30, %s31
      %p42 = scmp.eq.s32.totalorder %s22, 0
      %p43 = por %p41, %p42
      %p44 = scmp.ne.s32.totalorder %s30, %s31
      %p45 = scmp.eq.s32.totalorder %s23, 1
      %p46 = por %p44, %p45
      %p48 = scmp.ne.s32.totalorder %s31, %s47
      %p49 = scmp.eq.s32.totalorder %s23, 0
      %p50 = por %p48, %p49
      %s52 = sadd.s32 %s51, 1
      %p55 = scmp.eq.s32.totalorder %s17, 1
      %p56 = scmp.ne.s32.totalorder %s51, %s53
      %p57 = scmp.eq.s32.totalorder %s17, 0
      %p58 = por %p56, %p57
      %p59 = scmp.ne.s32.totalorder %s51, %s53
      %p60 = scmp.eq.s32.totalorder %s22, 1
      %p61 = por %p59, %p60
      %p62 = scmp.ne.s32.totalorder %s53, %s54
      %p63 = scmp.eq.s32.totalorder %s22, 0
      %p64 = por %p62, %p63
      %p65 = scmp.ne.s32.totalorder %s53, %s54
      %p66 = scmp.eq.s32.totalorder %s23, 1
      %p67 = por %p65, %p66
      %p69 = scmp.ne.s32.totalorder %s54, %s68
      %p70 = scmp.eq.s32.totalorder %s23, 0
      %p71 = por %p69, %p70
      %s73 = sadd.s32 %s72, 1
      %p76 = scmp.eq.s32.totalorder %s17, 1
      %p77 = scmp.ne.s32.totalorder %s72, %s74
      %p78 = scmp.eq.s32.totalorder %s17, 0
      %p79 = por %p77, %p78
      %p80 = scmp.ne.s32.totalorder %s72, %s74
      %p81 = scmp.eq.s32.totalorder %s22, 1
      %p82 = por %p80, %p81
      %p83 = scmp.ne.s32.totalorder %s74, %s75
      %p84 = scmp.eq.s32.totalorder %s22, 0
      %p85 = por %p83, %p84
      %p86 = scmp.ne.s32.totalorder %s74, %s75
      %p87 = scmp.eq.s32.totalorder %s23, 1
      %p88 = por %p86, %p87
      %p90 = scmp.ne.s32.totalorder %s75, %s89
      %p91 = scmp.eq.s32.totalorder %s23, 0
      %p92 = por %p90, %p91
      %s94 = sadd.s32 %s93, 1
      %p97 = scmp.eq.s32.totalorder %s17, 1
      %p98 = scmp.ne.s32.totalorder %s93, %s95
      %p99 = scmp.eq.s32.totalorder %s17, 0
      %p100 = por %p98, %p99
      %p101 = scmp.ne.s32.totalorder %s93, %s95
      %p102 = scmp.eq.s32.totalorder %s22, 1
      %p103 = por %p101, %p102
      %p104 = scmp.ne.s32.totalorder %s95, %s96
      %p105 = scmp.eq.s32.totalorder %s22, 0
      %p106 = por %p104, %p105
      %p107 = scmp.ne.s32.totalorder %s95, %s96
      %p108 = scmp.eq.s32.totalorder %s23, 1
      %p109 = por %p107, %p108
      %p111 = scmp.ne.s32.totalorder %s96, %s110
      %p112 = scmp.eq.s32.totalorder %s23, 0
      %p113 = por %p111, %p112
      %s115 = sadd.s32 %s114, 1
      %p118 = scmp.eq.s32.totalorder %s17, 1
      %p119 = scmp.ne.s32.totalorder %s114, %s116
      %p120 = scmp.eq.s32.totalorder %s17, 0
      %p121 = por %p119, %p120
      %p122 = scmp.ne.s32.totalorder %s114, %s116
      %p123 = scmp.eq.s32.totalorder %s22, 1
      %p124 = por %p122, %p123
      %p125 = scmp.ne.s32.totalorder %s116, %s117
      %p126 = scmp.eq.s32.totalorder %s22, 0
      %p127 = por %p125, %p126
      %p128 = scmp.ne.s32.totalorder %s116, %s117
      %p129 = scmp.eq.s32.totalorder %s23, 1
      %p130 = por %p128, %p129
      %p132 = scmp.ne.s32.totalorder %s117, %s131
      %p133 = scmp.eq.s32.totalorder %s23, 0
      %p134 = por %p132, %p133
      %s136 = sadd.s32 %s135, 1
      %p139 = scmp.eq.s32.totalorder %s17, 1
      %p140 = scmp.ne.s32.totalorder %s135, %s137
      %p141 = scmp.eq.s32.totalorder %s17, 0
      %p142 = por %p140, %p141
      %p143 = scmp.ne.s32.totalorder %s135, %s137
      %p144 = scmp.eq.s32.totalorder %s22, 1
      %p145 = por %p143, %p144
      %p146 = scmp.ne.s32.totalorder %s137, %s138
      %p147 = scmp.eq.s32.totalorder %s22, 0
      %p148 = por %p146, %p147
      %p149 = scmp.ne.s32.totalorder %s137, %s138
      %p150 = scmp.eq.s32.totalorder %s23, 1
      %p151 = por %p149, %p150
      %p153 = scmp.ne.s32.totalorder %s138, %s152
      %p154 = scmp.eq.s32.totalorder %s23, 0
      %p155 = por %p153, %p154
      %s157 = sadd.s32 %s156, 1
      %p160 = scmp.eq.s32.totalorder %s17, 1
      %p161 = scmp.ne.s32.totalorder %s156, %s158
      %p162 = scmp.eq.s32.totalorder %s17, 0
      %p163 = por %p161, %p162
      %p164 = scmp.ne.s32.totalorder %s156, %s158
      %p165 = scmp.eq.s32.totalorder %s22, 1
      %p166 = por %p164, %p165
      %p167 = scmp.ne.s32.totalorder %s158, %s159
      %p168 = scmp.eq.s32.totalorder %s22, 0
      %p169 = por %p167, %p168
      %p170 = scmp.ne.s32.totalorder %s158, %s159
      %p171 = scmp.eq.s32.totalorder %s23, 1
      %p172 = por %p170, %p171
      %p174 = scmp.ne.s32.totalorder %s159, %s173
      %p175 = scmp.eq.s32.totalorder %s23, 0
      %p176 = por %p174, %p175
      %s177 = ssub.s32 %s17, %s24
      %p178 = scmp.eq.s32.totalorder %s177, 0
      %s180 = sadd.s32 %s179, 1
      %s181 = scalar_select %p178, %s179, %s180
      %p184 = pneg %p178
      %p185 = scmp.eq.s32.totalorder %s17, 1
      %p186 = por %p184, %p185
      %p187 = scmp.ne.s32.totalorder %s179, %s182
      %p188 = scmp.eq.s32.totalorder %s17, 0
      %p189 = por %p187, %p188
      %p190 = scmp.ne.s32.totalorder %s179, %s182
      %p191 = scmp.eq.s32.totalorder %s22, 1
      %p192 = por %p190, %p191
      %p193 = scmp.ne.s32.totalorder %s182, %s183
      %p194 = scmp.eq.s32.totalorder %s22, 0
      %p195 = por %p193, %p194
      %p196 = scmp.ne.s32.totalorder %s182, %s183
      %p197 = scmp.eq.s32.totalorder %s23, 1
      %p198 = por %p196, %p197
      %p200 = scmp.ne.s32.totalorder %s183, %s199
      %p201 = scmp.eq.s32.totalorder %s23, 0
      %p202 = por %p200, %p201
      %p203 = scmp.le.s32.totalorder 1, %s17
      %p204 = scmp.lt.s32.totalorder %s17, 3
      %p205 = pnand %p203, %p204
      %p206 = pneg %p205
      // Predicated region
      $region9: #{tpu_custom_call.1} parent=5 // pred_check
        _
      $region10: #{tpu_custom_call.1} parent=5 // pred_check_branch
        %208 = sbr.rel (%p205) target = $region12
      $region11: #{tpu_custom_call.1} parent=5 // pred_region
        %s209 = ssub.s32 %s17, 1
        // Predicated region
        $region13: #{tpu_custom_call.1} parent=11 // pred_check
          %p210 = pneg %p64
        $region14: #{tpu_custom_call.1} parent=11 // pred_check_branch
          %212 = sbr.rel (%p210) target = $region16
        $region15: #{tpu_custom_call.1} parent=11 // pred_region
          %214 = vsyncadd [#allocation5], 0
          %s216 = sshll.u32 %s1, 4
          %s217 = int_to_ptr.vmem [resolvable:$true] %s216
          %219 = dma.vmem_to_smem %s217, 16, [#allocation3], [#allocation5]
        $region16: #{tpu_custom_call.1} parent=11 // pred_fallthru
          _
        // Predicated region
        $region17: #{tpu_custom_call.1} parent=11 // pred_check
          %p220 = pneg %p85
        $region18: #{tpu_custom_call.1} parent=11 // pred_check_branch
          %222 = sbr.rel (%p220) target = $region20
        $region19: #{tpu_custom_call.1} parent=11 // pred_region
          _
        $region20: #{tpu_custom_call.1} parent=11 // pred_fallthru
          _
        // Predicated region
        $region21: #{tpu_custom_call.1} parent=11 // pred_check
          %p223 = pneg %p106
        $region22: #{tpu_custom_call.1} parent=11 // pred_check_branch
          %225 = sbr.rel (%p223) target = $region24
        $region23: #{tpu_custom_call.1} parent=11 // pred_region
          _
        $region24: #{tpu_custom_call.1} parent=11 // pred_fallthru
          _
        // Predicated region
        $region25: #{tpu_custom_call.1} parent=11 // pred_check
          %p226 = pneg %p127
        $region26: #{tpu_custom_call.1} parent=11 // pred_check_branch
          %228 = sbr.rel (%p226) target = $region28
        $region27: #{tpu_custom_call.1} parent=11 // pred_region
          _
        $region28: #{tpu_custom_call.1} parent=11 // pred_fallthru
          _
        // Predicated region
        $region29: #{tpu_custom_call.1} parent=11 // pred_check
          %p229 = pneg %p148
        $region30: #{tpu_custom_call.1} parent=11 // pred_check_branch
          %231 = sbr.rel (%p229) target = $region32
        $region31: #{tpu_custom_call.1} parent=11 // pred_region
          _
        $region32: #{tpu_custom_call.1} parent=11 // pred_fallthru
          _
        // Predicated region
        $region33: #{tpu_custom_call.1} parent=11 // pred_check
          %p232 = pneg %p169
        $region34: #{tpu_custom_call.1} parent=11 // pred_check_branch
          %234 = sbr.rel (%p232) target = $region36
        $region35: #{tpu_custom_call.1} parent=11 // pred_region
          _
        $region36: #{tpu_custom_call.1} parent=11 // pred_fallthru
          _
      $region12: #{tpu_custom_call.1} parent=5 // pred_fallthru
        _
      %p235 = scmp.lt.s32.totalorder %s17, 2
      // Predicated region
      $region37: #{tpu_custom_call.1} parent=5 // pred_check
        %p236 = pneg %p235
      $region38: #{tpu_custom_call.1} parent=5 // pred_check_branch
        %238 = sbr.rel (%p236) target = $region40
      $region39: #{tpu_custom_call.1} parent=5 // pred_region
        // Predicated region
        $region41: #{tpu_custom_call.1} parent=39 // pred_check
          %p239 = pneg %p37
        $region42: #{tpu_custom_call.1} parent=39 // pred_check_branch
          %241 = sbr.rel (%p239) target = $region44
        $region43: #{tpu_custom_call.1} parent=39 // pred_region
          %s242 = smul.u32 4, %s17
          %p243 = scmp.lt.s32.totalorder %s242, 7
          %s244 = scalar_select %p243, %s242, 7
          %s245 = smul.addr %s244, 2
          %s246 = scalar_lea.vmem %s0, %s245
          %s247 = smul.u32 4, %s17
        $region44: #{tpu_custom_call.1} parent=39 // pred_fallthru
          _
      $region40: #{tpu_custom_call.1} parent=5 // pred_fallthru
        _
      %p248 = scmp.le.s32.totalorder 1, %s17
      %p249 = scmp.lt.s32.totalorder %s17, 3
      %p250 = pnand %p248, %p249
      %p251 = pneg %p250
      // Predicated region
      $region45: #{tpu_custom_call.1} parent=5 // pred_check
        _
      $region46: #{tpu_custom_call.1} parent=5 // pred_check_branch
        %253 = sbr.rel (%p250) target = $region48
      $region47: #{tpu_custom_call.1} parent=5 // pred_region
        %s254 = ssub.s32 %s17, 1
        // Predicated region
        $region49: #{tpu_custom_call.1} parent=47 // pred_check
          %p255 = pneg %p64
        $region50: #{tpu_custom_call.1} parent=47 // pred_check_branch
          %257 = sbr.rel (%p255) target = $region52
        $region51: #{tpu_custom_call.1} parent=47 // pred_region
          %259 = dma.done [#allocation5], 16
        $region52: #{tpu_custom_call.1} parent=47 // pred_fallthru
          _
        %260 = sfence
        %s261 = smul.u32 4, %s22
        %p262 = scmp.lt.s32.totalorder %s261, 7
        %s263 = scalar_select %p262, %s261, 7
        %s264 = smul.addr %s263, 2
        %s265 = scalar_lea.vmem %s0, %s264
        %p266 = pneg %p43
        %p267 = pneg %p40
        %p268 = pneg %p64
        %p269 = pneg %p61
        %p270 = pneg %p85
        %p271 = pneg %p82
        %p272 = pneg %p106
        %p273 = pneg %p103
        %p274 = pneg %p127
        %p275 = pneg %p124
        %p276 = pneg %p148
        %p277 = pneg %p145
        %p278 = pneg %p169
        %p279 = pneg %p166
        %p280 = pneg %p195
        %p281 = pneg %p192
        %s282 = sand.u32 %s182, 1
        %s283 = scalar_lea.sflag [#allocation4], %s282
        %s284 = sand.u32 %s182, 1
        %s285 = smul.addr %s284, 16
        %s286 = scalar_lea.vmem [#allocation6], %s285
        %s287 = smul.u32 4, %s22
        %p288 = scmp.lt.s32.totalorder %s287, 7
        %s289 = scalar_select %p288, %s287, 7
        %s290 = smul.addr %s289, 2
        %s291 = scalar_lea.vmem %s0, %s290
        %s292 = smul.u32 4, %s22
        %s293 = smul.u32 8, %s22
        %s294 = sld [smem:[#allocation3]]
        %s295 = sld [smem:[#allocation3 + $0x1]]
        %s296 = sld [smem:[#allocation3 + $0x2]]
        %s297 = sld [smem:[#allocation3 + $0x3]]
        %s298 = ssub.f32 %s296, %s294
        %v299 = vstv %s298
        %v300 = vrcp.pop %v299
        %v301 = vmul.f32 %v299, %v300
        %v302 = vsub.f32 1.0, %v301
        %v303 = vmul.f32 %v300, %v302
        %v304 = vadd.f32 %v300, %v303
        %vm305 = vweird.f32 %v299
        %vm306 = vweird.f32 %v300
        %vm307 = vmor %vm305, %vm306
        %v308 = vsel %vm307, %v300, %v304
        %v309 = vand.u32 2147483647, %v299
        %vm310 = vcmp.eq.f32.partialorder %v309, 8.507059e+37
        %v311 = vand.u32 %v299, 2147483648
        %v312 = vor.u32 1.1754944e-38, %v311
        %v313 = vsel %vm310, %v312, %v308
        %s314 = vtos %v313
        %s315 = smul.f32 2.0, %s314
        %s316 = ssub.f32 %s297, %s295
        %v317 = vstv %s316
        %v318 = vrcp.pop %v317
        %v319 = vmul.f32 %v317, %v318
        %v320 = vsub.f32 1.0, %v319
        %v321 = vmul.f32 %v318, %v320
        %v322 = vadd.f32 %v318, %v321
        %vm323 = vweird.f32 %v317
        %vm324 = vweird.f32 %v318
        %vm325 = vmor %vm323, %vm324
        %v326 = vsel %vm325, %v318, %v322
        %v327 = vand.u32 2147483647, %v317
        %vm328 = vcmp.eq.f32.partialorder %v327, 8.507059e+37
        %v329 = vand.u32 %v317, 2147483648
        %v330 = vor.u32 1.1754944e-38, %v329
        %v331 = vsel %vm328, %v330, %v326
        %s332 = vtos %v331
        %s333 = smul.f32 2.0, %s332
        %v334 = vld [vmem:[%s291] ss:$2 sm:$0xf]
        %s335 = scalar_lea.vmem %s291, 1
        %v336 = vld [vmem:[%s335] ss:$2 sm:$0xf]
        %v337 = vstv %s294
        %v338 = vsub.f32 %v334, %v337
        %v339 = vstv %s315
        %v340 = vmul.f32 %v338, %v339
        %v341 = vsub.f32 %v340, 1.0
        %v342 = vstv %s295
        %v343 = vsub.f32 %v336, %v342
        %v344 = vstv %s333
        %v345 = vmul.f32 %v343, %v344
        %v346 = vsub.f32 %v345, 1.0
        %v347 = vld [vmem:[%s3] sm:$0xff]
        %v348 = vld [vmem:[%s3 + $0x8] sm:$0xff]
        %v349 = vld [vmem:[%s3 + $0x10] sm:$0xff]
        %v350 = vld [vmem:[%s3 + $0x18] sm:$0xff]
        %v351 = vld [vmem:[%s2] sm:$0xff]
        %v352 = vld [vmem:[%s2 + $0x8] sm:$0xff]
        %v353 = vld [vmem:[%s2 + $0x10] sm:$0xff]
        %v354 = vld [vmem:[%s2 + $0x18] sm:$0xff]
        %356 = vset.pattern.permute.xlu0 0
        %357 = vperm.xlu0 %356, %v347
        %v358 = vpop.permute.xlu0 %357
        %361 = vset.pattern.permute.xlu0 0
        %362 = vperm.xlu0 %361, %v348
        %v363 = vpop.permute.xlu0 %362
        %366 = vset.pattern.permute.xlu0 0
        %367 = vperm.xlu0 %366, %v349
        %v368 = vpop.permute.xlu0 %367
        %371 = vset.pattern.permute.xlu0 0
        %372 = vperm.xlu0 %371, %v350
        %v373 = vpop.permute.xlu0 %372
        %v376 = vperm.slane %v341, 0
        %v377 = vperm.slane %v341, 1
        %v378 = vperm.slane %v341, 2
        %v379 = vperm.slane %v341, 3
        %v384 = vmul.f32 %v358, %v376
        %v385 = vmul.f32 %v358, %v377
        %v386 = vmul.f32 %v358, %v378
        %v387 = vmul.f32 %v358, %v379
        %v388 = vmul.f32 %v363, %v376
        %v389 = vmul.f32 %v363, %v377
        %v390 = vmul.f32 %v363, %v378
        %v391 = vmul.f32 %v363, %v379
        %v392 = vmul.f32 %v368, %v376
        %v393 = vmul.f32 %v368, %v377
        %v394 = vmul.f32 %v368, %v378
        %v395 = vmul.f32 %v368, %v379
        %v396 = vmul.f32 %v373, %v376
        %v397 = vmul.f32 %v373, %v377
        %v398 = vmul.f32 %v373, %v378
        %v399 = vmul.f32 %v373, %v379
        %400 = vset.pattern.permute.xlu0 1
        %401 = vperm.xlu0 %400, %v347
        %v402 = vpop.permute.xlu0 %401
        %404 = vset.pattern.permute.xlu0 1
        %405 = vperm.xlu0 %404, %v348
        %v406 = vpop.permute.xlu0 %405
        %408 = vset.pattern.permute.xlu0 1
        %409 = vperm.xlu0 %408, %v349
        %v410 = vpop.permute.xlu0 %409
        %412 = vset.pattern.permute.xlu0 1
        %413 = vperm.xlu0 %412, %v350
        %v414 = vpop.permute.xlu0 %413
        %v417 = vperm.slane %v346, 0
        %v418 = vperm.slane %v346, 1
        %v419 = vperm.slane %v346, 2
        %v420 = vperm.slane %v346, 3
        %v425 = vmul.f32 %v402, %v417
        %v426 = vmul.f32 %v402, %v418
        %v427 = vmul.f32 %v402, %v419
        %v428 = vmul.f32 %v402, %v420
        %v429 = vmul.f32 %v406, %v417
        %v430 = vmul.f32 %v406, %v418
        %v431 = vmul.f32 %v406, %v419
        %v432 = vmul.f32 %v406, %v420
        %v433 = vmul.f32 %v410, %v417
        %v434 = vmul.f32 %v410, %v418
        %v435 = vmul.f32 %v410, %v419
        %v436 = vmul.f32 %v410, %v420
        %v437 = vmul.f32 %v414, %v417
        %v438 = vmul.f32 %v414, %v418
        %v439 = vmul.f32 %v414, %v419
        %v440 = vmul.f32 %v414, %v420
        %v441 = vadd.f32 %v384, %v425
        %v442 = vadd.f32 %v385, %v426
        %v443 = vadd.f32 %v386, %v427
        %v444 = vadd.f32 %v387, %v428
        %v445 = vadd.f32 %v388, %v429
        %v446 = vadd.f32 %v389, %v430
        %v447 = vadd.f32 %v390, %v431
        %v448 = vadd.f32 %v391, %v432
        %v449 = vadd.f32 %v392, %v433
        %v450 = vadd.f32 %v393, %v434
        %v451 = vadd.f32 %v394, %v435
        %v452 = vadd.f32 %v395, %v436
        %v453 = vadd.f32 %v396, %v437
        %v454 = vadd.f32 %v397, %v438
        %v455 = vadd.f32 %v398, %v439
        %v456 = vadd.f32 %v399, %v440
        %458 = vset.pattern.permute.xlu0 0
        %459 = vperm.xlu0 %458, %v351
        %v460 = vpop.permute.xlu0 %459
        %463 = vset.pattern.permute.xlu0 0
        %464 = vperm.xlu0 %463, %v352
        %v465 = vpop.permute.xlu0 %464
        %468 = vset.pattern.permute.xlu0 0
        %469 = vperm.xlu0 %468, %v353
        %v470 = vpop.permute.xlu0 %469
        %473 = vset.pattern.permute.xlu0 0
        %474 = vperm.xlu0 %473, %v354
        %v475 = vpop.permute.xlu0 %474
        %v477 = vadd.f32 %v441, %v460
        %v478 = vadd.f32 %v442, %v460
        %v479 = vadd.f32 %v443, %v460
        %v480 = vadd.f32 %v444, %v460
        %v481 = vadd.f32 %v445, %v465
        %v482 = vadd.f32 %v446, %v465
        %v483 = vadd.f32 %v447, %v465
        %v484 = vadd.f32 %v448, %v465
        %v485 = vadd.f32 %v449, %v470
        %v486 = vadd.f32 %v450, %v470
        %v487 = vadd.f32 %v451, %v470
        %v488 = vadd.f32 %v452, %v470
        %v489 = vadd.f32 %v453, %v475
        %v490 = vadd.f32 %v454, %v475
        %v491 = vadd.f32 %v455, %v475
        %v492 = vadd.f32 %v456, %v475
        %v493 = vmul.f32 %v339, %v347
        %v494 = vmul.f32 %v339, %v348
        %v495 = vmul.f32 %v339, %v349
        %v496 = vmul.f32 %v339, %v350
        %v497 = vtanh.pop %v477
        %v498 = vtanh.pop %v478
        %v499 = vtanh.pop %v479
        %v500 = vtanh.pop %v480
        %v501 = vtanh.pop %v481
        %v502 = vtanh.pop %v482
        %v503 = vtanh.pop %v483
        %v504 = vtanh.pop %v484
        %v505 = vtanh.pop %v485
        %v506 = vtanh.pop %v486
        %v507 = vtanh.pop %v487
        %v508 = vtanh.pop %v488
        %v509 = vtanh.pop %v489
        %v510 = vtanh.pop %v490
        %v511 = vtanh.pop %v491
        %v512 = vtanh.pop %v492
        %513 = vst [vmem:[#allocation2] sm:$0xff] %v497
        %514 = vst [vmem:[#allocation2 + $0x8] sm:$0xff] %v498
        %515 = vst [vmem:[#allocation2 + $0x10] sm:$0xff] %v499
        %516 = vst [vmem:[#allocation2 + $0x18] sm:$0xff] %v500
        %517 = vst [vmem:[#allocation2 + $0x40] sm:$0xff] %v501
        %518 = vst [vmem:[#allocation2 + $0x48] sm:$0xff] %v502
        %519 = vst [vmem:[#allocation2 + $0x50] sm:$0xff] %v503
        %520 = vst [vmem:[#allocation2 + $0x58] sm:$0xff] %v504
        %521 = vst [vmem:[#allocation2 + $0x80] sm:$0xff] %v505
        %522 = vst [vmem:[#allocation2 + $0x88] sm:$0xff] %v506
        %523 = vst [vmem:[#allocation2 + $0x90] sm:$0xff] %v507
        %524 = vst [vmem:[#allocation2 + $0x98] sm:$0xff] %v508
        %525 = vst [vmem:[#allocation2 + $0xc0] sm:$0xff] %v509
        %526 = vst [vmem:[#allocation2 + $0xc8] sm:$0xff] %v510
        %527 = vst [vmem:[#allocation2 + $0xd0] sm:$0xff] %v511
        %528 = vst [vmem:[#allocation2 + $0xd8] sm:$0xff] %v512
        %v529 = vmul.f32 %v497, %v497
        %v530 = vmul.f32 %v498, %v498
        %v531 = vmul.f32 %v499, %v499
        %v532 = vmul.f32 %v500, %v500
        %v533 = vmul.f32 %v501, %v501
        %v534 = vmul.f32 %v502, %v502
        %v535 = vmul.f32 %v503, %v503
        %v536 = vmul.f32 %v504, %v504
        %v537 = vmul.f32 %v505, %v505
        %v538 = vmul.f32 %v506, %v506
        %v539 = vmul.f32 %v507, %v507
        %v540 = vmul.f32 %v508, %v508
        %v541 = vmul.f32 %v509, %v509
        %v542 = vmul.f32 %v510, %v510
        %v543 = vmul.f32 %v511, %v511
        %v544 = vmul.f32 %v512, %v512
        %v545 = vsub.f32 1.0, %v529
        %v546 = vsub.f32 1.0, %v530
        %v547 = vsub.f32 1.0, %v531
        %v548 = vsub.f32 1.0, %v532
        %v549 = vsub.f32 1.0, %v533
        %v550 = vsub.f32 1.0, %v534
        %v551 = vsub.f32 1.0, %v535
        %v552 = vsub.f32 1.0, %v536
        %v553 = vsub.f32 1.0, %v537
        %v554 = vsub.f32 1.0, %v538
        %v555 = vsub.f32 1.0, %v539
        %v556 = vsub.f32 1.0, %v540
        %v557 = vsub.f32 1.0, %v541
        %v558 = vsub.f32 1.0, %v542
        %v559 = vsub.f32 1.0, %v543
        %v560 = vsub.f32 1.0, %v544
        %562 = vset.pattern.permute.xlu0 0
        %563 = vperm.xlu0 %562, %v493
        %v564 = vpop.permute.xlu0 %563
        %567 = vset.pattern.permute.xlu0 0
        %568 = vperm.xlu0 %567, %v494
        %v569 = vpop.permute.xlu0 %568
        %572 = vset.pattern.permute.xlu0 0
        %573 = vperm.xlu0 %572, %v495
        %v574 = vpop.permute.xlu0 %573
        %577 = vset.pattern.permute.xlu0 0
        %578 = vperm.xlu0 %577, %v496
        %v579 = vpop.permute.xlu0 %578
        %v581 = vmul.f32 %v564, %v545
        %v582 = vmul.f32 %v564, %v546
        %v583 = vmul.f32 %v564, %v547
        %v584 = vmul.f32 %v564, %v548
        %v585 = vmul.f32 %v569, %v549
        %v586 = vmul.f32 %v569, %v550
        %v587 = vmul.f32 %v569, %v551
        %v588 = vmul.f32 %v569, %v552
        %v589 = vmul.f32 %v574, %v553
        %v590 = vmul.f32 %v574, %v554
        %v591 = vmul.f32 %v574, %v555
        %v592 = vmul.f32 %v574, %v556
        %v593 = vmul.f32 %v579, %v557
        %v594 = vmul.f32 %v579, %v558
        %v595 = vmul.f32 %v579, %v559
        %v596 = vmul.f32 %v579, %v560
        %597 = vst [vmem:[#allocation2 + $0x20] sm:$0xff] %v581
        %598 = vst [vmem:[#allocation2 + $0x28] sm:$0xff] %v582
        %599 = vst [vmem:[#allocation2 + $0x30] sm:$0xff] %v583
        %600 = vst [vmem:[#allocation2 + $0x38] sm:$0xff] %v584
        %601 = vst [vmem:[#allocation2 + $0x60] sm:$0xff] %v585
        %602 = vst [vmem:[#allocation2 + $0x68] sm:$0xff] %v586
        %603 = vst [vmem:[#allocation2 + $0x70] sm:$0xff] %v587
        %604 = vst [vmem:[#allocation2 + $0x78] sm:$0xff] %v588
        %605 = vst [vmem:[#allocation2 + $0xa0] sm:$0xff] %v589
        %606 = vst [vmem:[#allocation2 + $0xa8] sm:$0xff] %v590
        %607 = vst [vmem:[#allocation2 + $0xb0] sm:$0xff] %v591
        %608 = vst [vmem:[#allocation2 + $0xb8] sm:$0xff] %v592
        %609 = vst [vmem:[#allocation2 + $0xe0] sm:$0xff] %v593
        %610 = vst [vmem:[#allocation2 + $0xe8] sm:$0xff] %v594
        %611 = vst [vmem:[#allocation2 + $0xf0] sm:$0xff] %v595
        %612 = vst [vmem:[#allocation2 + $0xf8] sm:$0xff] %v596
        %v613 = vld [vmem:[%s4] sm:$0xff]
        %v614 = vld [vmem:[%s4 + $0x8] sm:$0xff]
        %v615 = vld [vmem:[%s4 + $0x10] sm:$0xff]
        %v616 = vld [vmem:[%s4 + $0x18] sm:$0xff]
        %v617 = vld [vmem:[%s2 + $0x20] sm:$0xff]
        %v618 = vld [vmem:[%s2 + $0x28] sm:$0xff]
        %v619 = vld [vmem:[%s2 + $0x30] sm:$0xff]
        %v620 = vld [vmem:[%s2 + $0x38] sm:$0xff]
        %v621 = vld [vmem:[#allocation2] sm:$0xff]
        %v622 = vld [vmem:[#allocation2 + $0x8] sm:$0xff]
        %v623 = vld [vmem:[#allocation2 + $0x10] sm:$0xff]
        %v624 = vld [vmem:[#allocation2 + $0x18] sm:$0xff]
        %v625 = vld [vmem:[#allocation2 + $0x20] sm:$0xff]
        %v626 = vld [vmem:[#allocation2 + $0x28] sm:$0xff]
        %v627 = vld [vmem:[#allocation2 + $0x30] sm:$0xff]
        %v628 = vld [vmem:[#allocation2 + $0x38] sm:$0xff]
        %v629 = vld [vmem:[#allocation2 + $0x40] sm:$0xff]
        %v630 = vld [vmem:[#allocation2 + $0x48] sm:$0xff]
        %v631 = vld [vmem:[#allocation2 + $0x50] sm:$0xff]
        %v632 = vld [vmem:[#allocation2 + $0x58] sm:$0xff]
        %v633 = vld [vmem:[#allocation2 + $0x60] sm:$0xff]
        %v634 = vld [vmem:[#allocation2 + $0x68] sm:$0xff]
        %v635 = vld [vmem:[#allocation2 + $0x70] sm:$0xff]
        %v636 = vld [vmem:[#allocation2 + $0x78] sm:$0xff]
        %v637 = vld [vmem:[#allocation2 + $0x80] sm:$0xff]
        %v638 = vld [vmem:[#allocation2 + $0x88] sm:$0xff]
        %v639 = vld [vmem:[#allocation2 + $0x90] sm:$0xff]
        %v640 = vld [vmem:[#allocation2 + $0x98] sm:$0xff]
        %v641 = vld [vmem:[#allocation2 + $0xa0] sm:$0xff]
        %v642 = vld [vmem:[#allocation2 + $0xa8] sm:$0xff]
        %v643 = vld [vmem:[#allocation2 + $0xb0] sm:$0xff]
        %v644 = vld [vmem:[#allocation2 + $0xb8] sm:$0xff]
        %v645 = vld [vmem:[#allocation2 + $0xc0] sm:$0xff]
        %v646 = vld [vmem:[#allocation2 + $0xc8] sm:$0xff]
        %v647 = vld [vmem:[#allocation2 + $0xd0] sm:$0xff]
        %v648 = vld [vmem:[#allocation2 + $0xd8] sm:$0xff]
        %v649 = vld [vmem:[#allocation2 + $0xe0] sm:$0xff]
        %v650 = vld [vmem:[#allocation2 + $0xe8] sm:$0xff]
        %v651 = vld [vmem:[#allocation2 + $0xf0] sm:$0xff]
        %v652 = vld [vmem:[#allocation2 + $0xf8] sm:$0xff]
        %vm653 = vcmask 261120
        %v655 = vsel %vm653, %v613, 0
        %v658 = vsel %vm653, %v614, 0
        %v661 = vsel %vm653, %v615, 0
        %v664 = vsel %vm653, %v616, 0
        %666 = vmatpush.msra.mxu0 0.0
        %667 = vmatpush.msra.mxu0 0.0
        %668 = vmatpush.msra.mxu0 0.0
        %669 = vmatpush.msra.mxu0 0.0
        %670 = vmatpush.msra.mxu0 0.0
        %671 = vmatpush.msra.mxu0 0.0
        %672 = vmatpush.msra.mxu0 0.0
        %673 = vmatpush.msra.mxu0 0.0
        %674 = vmatpush.msra.mxu0 0.0
        %675 = vmatpush.msra.mxu0 0.0
        %676 = vmatpush.msra.mxu0 0.0
        %677 = vmatpush.msra.mxu0 0.0
        %678 = vmatpush.msra.mxu0 %v645
        %679 = vmatpush.msra.mxu0 %v637
        %680 = vmatpush.msra.mxu0 %v629
        %681 = vmatpush.msra.mxu0 %v621
        %682 = vmatmul.f32.gmra.mxu0 %v655
        %v683 = vpop.f32.mrf.mxu0
        %v684 = vadd.f32 0.0, %v683
        %685 = vmatmul.f32.gmra.mxu0 %v658
        %v686 = vpop.f32.mrf.mxu0
        %v687 = vadd.f32 0.0, %v686
        %688 = vmatmul.f32.gmra.mxu0 %v661
        %v689 = vpop.f32.mrf.mxu0
        %v690 = vadd.f32 0.0, %v689
        %691 = vmatmul.f32.gmra.mxu0 %v664
        %v692 = vpop.f32.mrf.mxu0
        %v693 = vadd.f32 0.0, %v692
        %694 = vdwg.mxu0
        %695 = vmatpush.msra.mxu0 0.0
        %696 = vmatpush.msra.mxu0 0.0
        %697 = vmatpush.msra.mxu0 0.0
        %698 = vmatpush.msra.mxu0 0.0
        %699 = vmatpush.msra.mxu0 0.0
        %700 = vmatpush.msra.mxu0 0.0
        %701 = vmatpush.msra.mxu0 0.0
        %702 = vmatpush.msra.mxu0 0.0
        %703 = vmatpush.msra.mxu0 0.0
        %704 = vmatpush.msra.mxu0 0.0
        %705 = vmatpush.msra.mxu0 0.0
        %706 = vmatpush.msra.mxu0 0.0
        %707 = vmatpush.msra.mxu0 %v646
        %708 = vmatpush.msra.mxu0 %v638
        %709 = vmatpush.msra.mxu0 %v630
        %710 = vmatpush.msra.mxu0 %v622
        %711 = vmatmul.f32.gmra.mxu0 %v655
        %v712 = vpop.f32.mrf.mxu0
        %v713 = vadd.f32 0.0, %v712
        %714 = vmatmul.f32.gmra.mxu0 %v658
        %v715 = vpop.f32.mrf.mxu0
        %v716 = vadd.f32 0.0, %v715
        %717 = vmatmul.f32.gmra.mxu0 %v661
        %v718 = vpop.f32.mrf.mxu0
        %v719 = vadd.f32 0.0, %v718
        %720 = vmatmul.f32.gmra.mxu0 %v664
        %v721 = vpop.f32.mrf.mxu0
        %v722 = vadd.f32 0.0, %v721
        %723 = vdwg.mxu0
        %724 = vmatpush.msra.mxu0 0.0
        %725 = vmatpush.msra.mxu0 0.0
        %726 = vmatpush.msra.mxu0 0.0
        %727 = vmatpush.msra.mxu0 0.0
        %728 = vmatpush.msra.mxu0 0.0
        %729 = vmatpush.msra.mxu0 0.0
        %730 = vmatpush.msra.mxu0 0.0
        %731 = vmatpush.msra.mxu0 0.0
        %732 = vmatpush.msra.mxu0 0.0
        %733 = vmatpush.msra.mxu0 0.0
        %734 = vmatpush.msra.mxu0 0.0
        %735 = vmatpush.msra.mxu0 0.0
        %736 = vmatpush.msra.mxu0 %v647
        %737 = vmatpush.msra.mxu0 %v639
        %738 = vmatpush.msra.mxu0 %v631
        %739 = vmatpush.msra.mxu0 %v623
        %740 = vmatmul.f32.gmra.mxu0 %v655
        %v741 = vpop.f32.mrf.mxu0
        %v742 = vadd.f32 0.0, %v741
        %743 = vmatmul.f32.gmra.mxu0 %v658
        %v744 = vpop.f32.mrf.mxu0
        %v745 = vadd.f32 0.0, %v744
        %746 = vmatmul.f32.gmra.mxu0 %v661
        %v747 = vpop.f32.mrf.mxu0
        %v748 = vadd.f32 0.0, %v747
        %749 = vmatmul.f32.gmra.mxu0 %v664
        %v750 = vpop.f32.mrf.mxu0
        %v751 = vadd.f32 0.0, %v750
        %752 = vdwg.mxu0
        %753 = vmatpush.msra.mxu0 0.0
        %754 = vmatpush.msra.mxu0 0.0
        %755 = vmatpush.msra.mxu0 0.0
        %756 = vmatpush.msra.mxu0 0.0
        %757 = vmatpush.msra.mxu0 0.0
        %758 = vmatpush.msra.mxu0 0.0
        %759 = vmatpush.msra.mxu0 0.0
        %760 = vmatpush.msra.mxu0 0.0
        %761 = vmatpush.msra.mxu0 0.0
        %762 = vmatpush.msra.mxu0 0.0
        %763 = vmatpush.msra.mxu0 0.0
        %764 = vmatpush.msra.mxu0 0.0
        %765 = vmatpush.msra.mxu0 %v648
        %766 = vmatpush.msra.mxu0 %v640
        %767 = vmatpush.msra.mxu0 %v632
        %768 = vmatpush.msra.mxu0 %v624
        %769 = vmatmul.f32.gmra.mxu0 %v655
        %v770 = vpop.f32.mrf.mxu0
        %v771 = vadd.f32 0.0, %v770
        %772 = vmatmul.f32.gmra.mxu0 %v658
        %v773 = vpop.f32.mrf.mxu0
        %v774 = vadd.f32 0.0, %v773
        %775 = vmatmul.f32.gmra.mxu0 %v661
        %v776 = vpop.f32.mrf.mxu0
        %v777 = vadd.f32 0.0, %v776
        %778 = vmatmul.f32.gmra.mxu0 %v664
        %v779 = vpop.f32.mrf.mxu0
        %v780 = vadd.f32 0.0, %v779
        %781 = vdwg.mxu0
        %782 = vmatpush.msra.mxu0 0.0
        %783 = vmatpush.msra.mxu0 0.0
        %784 = vmatpush.msra.mxu0 0.0
        %785 = vmatpush.msra.mxu0 0.0
        %786 = vmatpush.msra.mxu0 0.0
        %787 = vmatpush.msra.mxu0 0.0
        %788 = vmatpush.msra.mxu0 0.0
        %789 = vmatpush.msra.mxu0 0.0
        %790 = vmatpush.msra.mxu0 0.0
        %791 = vmatpush.msra.mxu0 0.0
        %792 = vmatpush.msra.mxu0 0.0
        %793 = vmatpush.msra.mxu0 0.0
        %794 = vmatpush.msra.mxu0 %v649
        %795 = vmatpush.msra.mxu0 %v641
        %796 = vmatpush.msra.mxu0 %v633
        %797 = vmatpush.msra.mxu0 %v625
        %798 = vmatmul.f32.gmra.mxu0 %v655
        %v799 = vpop.f32.mrf.mxu0
        %v800 = vadd.f32 0.0, %v799
        %801 = vmatmul.f32.gmra.mxu0 %v658
        %v802 = vpop.f32.mrf.mxu0
        %v803 = vadd.f32 0.0, %v802
        %804 = vmatmul.f32.gmra.mxu0 %v661
        %v805 = vpop.f32.mrf.mxu0
        %v806 = vadd.f32 0.0, %v805
        %807 = vmatmul.f32.gmra.mxu0 %v664
        %v808 = vpop.f32.mrf.mxu0
        %v809 = vadd.f32 0.0, %v808
        %810 = vdwg.mxu0
        %811 = vmatpush.msra.mxu0 0.0
        %812 = vmatpush.msra.mxu0 0.0
        %813 = vmatpush.msra.mxu0 0.0
        %814 = vmatpush.msra.mxu0 0.0
        %815 = vmatpush.msra.mxu0 0.0
        %816 = vmatpush.msra.mxu0 0.0
        %817 = vmatpush.msra.mxu0 0.0
        %818 = vmatpush.msra.mxu0 0.0
        %819 = vmatpush.msra.mxu0 0.0
        %820 = vmatpush.msra.mxu0 0.0
        %821 = vmatpush.msra.mxu0 0.0
        %822 = vmatpush.msra.mxu0 0.0
        %823 = vmatpush.msra.mxu0 %v650
        %824 = vmatpush.msra.mxu0 %v642
        %825 = vmatpush.msra.mxu0 %v634
        %826 = vmatpush.msra.mxu0 %v626
        %827 = vmatmul.f32.gmra.mxu0 %v655
        %v828 = vpop.f32.mrf.mxu0
        %v829 = vadd.f32 0.0, %v828
        %830 = vmatmul.f32.gmra.mxu0 %v658
        %v831 = vpop.f32.mrf.mxu0
        %v832 = vadd.f32 0.0, %v831
        %833 = vmatmul.f32.gmra.mxu0 %v661
        %v834 = vpop.f32.mrf.mxu0
        %v835 = vadd.f32 0.0, %v834
        %836 = vmatmul.f32.gmra.mxu0 %v664
        %v837 = vpop.f32.mrf.mxu0
        %v838 = vadd.f32 0.0, %v837
        %839 = vdwg.mxu0
        %840 = vmatpush.msra.mxu0 0.0
        %841 = vmatpush.msra.mxu0 0.0
        %842 = vmatpush.msra.mxu0 0.0
        %843 = vmatpush.msra.mxu0 0.0
        %844 = vmatpush.msra.mxu0 0.0
        %845 = vmatpush.msra.mxu0 0.0
        %846 = vmatpush.msra.mxu0 0.0
        %847 = vmatpush.msra.mxu0 0.0
        %848 = vmatpush.msra.mxu0 0.0
        %849 = vmatpush.msra.mxu0 0.0
        %850 = vmatpush.msra.mxu0 0.0
        %851 = vmatpush.msra.mxu0 0.0
        %852 = vmatpush.msra.mxu0 %v651
        %853 = vmatpush.msra.mxu0 %v643
        %854 = vmatpush.msra.mxu0 %v635
        %855 = vmatpush.msra.mxu0 %v627
        %856 = vmatmul.f32.gmra.mxu0 %v655
        %v857 = vpop.f32.mrf.mxu0
        %v858 = vadd.f32 0.0, %v857
        %859 = vmatmul.f32.gmra.mxu0 %v658
        %v860 = vpop.f32.mrf.mxu0
        %v861 = vadd.f32 0.0, %v860
        %862 = vmatmul.f32.gmra.mxu0 %v661
        %v863 = vpop.f32.mrf.mxu0
        %v864 = vadd.f32 0.0, %v863
        %865 = vmatmul.f32.gmra.mxu0 %v664
        %v866 = vpop.f32.mrf.mxu0
        %v867 = vadd.f32 0.0, %v866
        %868 = vdwg.mxu0
        %869 = vmatpush.msra.mxu0 0.0
        %870 = vmatpush.msra.mxu0 0.0
        %871 = vmatpush.msra.mxu0 0.0
        %872 = vmatpush.msra.mxu0 0.0
        %873 = vmatpush.msra.mxu0 0.0
        %874 = vmatpush.msra.mxu0 0.0
        %875 = vmatpush.msra.mxu0 0.0
        %876 = vmatpush.msra.mxu0 0.0
        %877 = vmatpush.msra.mxu0 0.0
        %878 = vmatpush.msra.mxu0 0.0
        %879 = vmatpush.msra.mxu0 0.0
        %880 = vmatpush.msra.mxu0 0.0
        %881 = vmatpush.msra.mxu0 %v652
        %882 = vmatpush.msra.mxu0 %v644
        %883 = vmatpush.msra.mxu0 %v636
        %884 = vmatpush.msra.mxu0 %v628
        %885 = vmatmul.f32.gmra.mxu0 %v655
        %v886 = vpop.f32.mrf.mxu0
        %v887 = vadd.f32 0.0, %v886
        %888 = vmatmul.f32.gmra.mxu0 %v658
        %v889 = vpop.f32.mrf.mxu0
        %v890 = vadd.f32 0.0, %v889
        %891 = vmatmul.f32.gmra.mxu0 %v661
        %v892 = vpop.f32.mrf.mxu0
        %v893 = vadd.f32 0.0, %v892
        %894 = vmatmul.f32.gmra.mxu0 %v664
        %v895 = vpop.f32.mrf.mxu0
        %v896 = vadd.f32 0.0, %v895
        %897 = vdwg.mxu0
        %899 = vset.pattern.permute.xlu0 0
        %900 = vperm.xlu0 %899, %v617
        %v901 = vpop.permute.xlu0 %900
        %904 = vset.pattern.permute.xlu0 0
        %905 = vperm.xlu0 %904, %v618
        %v906 = vpop.permute.xlu0 %905
        %909 = vset.pattern.permute.xlu0 0
        %910 = vperm.xlu0 %909, %v619
        %v911 = vpop.permute.xlu0 %910
        %914 = vset.pattern.permute.xlu0 0
        %915 = vperm.xlu0 %914, %v620
        %v916 = vpop.permute.xlu0 %915
        %v918 = vadd.f32 %v684, %v901
        %v919 = vadd.f32 %v713, %v901
        %v920 = vadd.f32 %v742, %v901
        %v921 = vadd.f32 %v771, %v901
        %v922 = vadd.f32 %v687, %v906
        %v923 = vadd.f32 %v716, %v906
        %v924 = vadd.f32 %v745, %v906
        %v925 = vadd.f32 %v774, %v906
        %v926 = vadd.f32 %v690, %v911
        %v927 = vadd.f32 %v719, %v911
        %v928 = vadd.f32 %v748, %v911
        %v929 = vadd.f32 %v777, %v911
        %v930 = vadd.f32 %v693, %v916
        %v931 = vadd.f32 %v722, %v916
        %v932 = vadd.f32 %v751, %v916
        %v933 = vadd.f32 %v780, %v916
        %v934 = vtanh.pop %v918
        %v935 = vtanh.pop %v919
        %v936 = vtanh.pop %v920
        %v937 = vtanh.pop %v921
        %v938 = vtanh.pop %v922
        %v939 = vtanh.pop %v923
        %v940 = vtanh.pop %v924
        %v941 = vtanh.pop %v925
        %v942 = vtanh.pop %v926
        %v943 = vtanh.pop %v927
        %v944 = vtanh.pop %v928
        %v945 = vtanh.pop %v929
        %v946 = vtanh.pop %v930
        %v947 = vtanh.pop %v931
        %v948 = vtanh.pop %v932
        %v949 = vtanh.pop %v933
        %950 = vst [vmem:[#allocation2] sm:$0xff] %v934
        %951 = vst [vmem:[#allocation2 + $0x8] sm:$0xff] %v935
        %952 = vst [vmem:[#allocation2 + $0x10] sm:$0xff] %v936
        %953 = vst [vmem:[#allocation2 + $0x18] sm:$0xff] %v937
        %954 = vst [vmem:[#allocation2 + $0x40] sm:$0xff] %v938
        %955 = vst [vmem:[#allocation2 + $0x48] sm:$0xff] %v939
        %956 = vst [vmem:[#allocation2 + $0x50] sm:$0xff] %v940
        %957 = vst [vmem:[#allocation2 + $0x58] sm:$0xff] %v941
        %958 = vst [vmem:[#allocation2 + $0x80] sm:$0xff] %v942
        %959 = vst [vmem:[#allocation2 + $0x88] sm:$0xff] %v943
        %960 = vst [vmem:[#allocation2 + $0x90] sm:$0xff] %v944
        %961 = vst [vmem:[#allocation2 + $0x98] sm:$0xff] %v945
        %962 = vst [vmem:[#allocation2 + $0xc0] sm:$0xff] %v946
        %963 = vst [vmem:[#allocation2 + $0xc8] sm:$0xff] %v947
        %964 = vst [vmem:[#allocation2 + $0xd0] sm:$0xff] %v948
        %965 = vst [vmem:[#allocation2 + $0xd8] sm:$0xff] %v949
        %v966 = vmul.f32 %v934, %v934
        %v967 = vmul.f32 %v935, %v935
        %v968 = vmul.f32 %v936, %v936
        %v969 = vmul.f32 %v937, %v937
        %v970 = vmul.f32 %v938, %v938
        %v971 = vmul.f32 %v939, %v939
        %v972 = vmul.f32 %v940, %v940
        %v973 = vmul.f32 %v941, %v941
        %v974 = vmul.f32 %v942, %v942
        %v975 = vmul.f32 %v943, %v943
        %v976 = vmul.f32 %v944, %v944
        %v977 = vmul.f32 %v945, %v945
        %v978 = vmul.f32 %v946, %v946
        %v979 = vmul.f32 %v947, %v947
        %v980 = vmul.f32 %v948, %v948
        %v981 = vmul.f32 %v949, %v949
        %v982 = vsub.f32 1.0, %v966
        %v983 = vsub.f32 1.0, %v967
        %v984 = vsub.f32 1.0, %v968
        %v985 = vsub.f32 1.0, %v969
        %v986 = vsub.f32 1.0, %v970
        %v987 = vsub.f32 1.0, %v971
        %v988 = vsub.f32 1.0, %v972
        %v989 = vsub.f32 1.0, %v973
        %v990 = vsub.f32 1.0, %v974
        %v991 = vsub.f32 1.0, %v975
        %v992 = vsub.f32 1.0, %v976
        %v993 = vsub.f32 1.0, %v977
        %v994 = vsub.f32 1.0, %v978
        %v995 = vsub.f32 1.0, %v979
        %v996 = vsub.f32 1.0, %v980
        %v997 = vsub.f32 1.0, %v981
        %v998 = vmul.f32 %v800, %v982
        %v999 = vmul.f32 %v829, %v983
        %v1000 = vmul.f32 %v858, %v984
        %v1001 = vmul.f32 %v887, %v985
        %v1002 = vmul.f32 %v803, %v986
        %v1003 = vmul.f32 %v832, %v987
        %v1004 = vmul.f32 %v861, %v988
        %v1005 = vmul.f32 %v890, %v989
        %v1006 = vmul.f32 %v806, %v990
        %v1007 = vmul.f32 %v835, %v991
        %v1008 = vmul.f32 %v864, %v992
        %v1009 = vmul.f32 %v893, %v993
        %v1010 = vmul.f32 %v809, %v994
        %v1011 = vmul.f32 %v838, %v995
        %v1012 = vmul.f32 %v867, %v996
        %v1013 = vmul.f32 %v896, %v997
        %1014 = vst [vmem:[#allocation2 + $0x20] sm:$0xff] %v998
        %1015 = vst [vmem:[#allocation2 + $0x28] sm:$0xff] %v999
        %1016 = vst [vmem:[#allocation2 + $0x30] sm:$0xff] %v1000
        %1017 = vst [vmem:[#allocation2 + $0x38] sm:$0xff] %v1001
        %1018 = vst [vmem:[#allocation2 + $0x60] sm:$0xff] %v1002
        %1019 = vst [vmem:[#allocation2 + $0x68] sm:$0xff] %v1003
        %1020 = vst [vmem:[#allocation2 + $0x70] sm:$0xff] %v1004
        %1021 = vst [vmem:[#allocation2 + $0x78] sm:$0xff] %v1005
        %1022 = vst [vmem:[#allocation2 + $0xa0] sm:$0xff] %v1006
        %1023 = vst [vmem:[#allocation2 + $0xa8] sm:$0xff] %v1007
        %1024 = vst [vmem:[#allocation2 + $0xb0] sm:$0xff] %v1008
        %1025 = vst [vmem:[#allocation2 + $0xb8] sm:$0xff] %v1009
        %1026 = vst [vmem:[#allocation2 + $0xe0] sm:$0xff] %v1010
        %1027 = vst [vmem:[#allocation2 + $0xe8] sm:$0xff] %v1011
        %1028 = vst [vmem:[#allocation2 + $0xf0] sm:$0xff] %v1012
        %1029 = vst [vmem:[#allocation2 + $0xf8] sm:$0xff] %v1013
        %v1030 = vld [vmem:[%s5] sm:$0xff]
        %v1031 = vld [vmem:[%s5 + $0x8] sm:$0xff]
        %v1032 = vld [vmem:[%s5 + $0x10] sm:$0xff]
        %v1033 = vld [vmem:[%s5 + $0x18] sm:$0xff]
        %v1034 = vld [vmem:[%s2 + $0x40] sm:$0xff]
        %v1035 = vld [vmem:[%s2 + $0x48] sm:$0xff]
        %v1036 = vld [vmem:[%s2 + $0x50] sm:$0xff]
        %v1037 = vld [vmem:[%s2 + $0x58] sm:$0xff]
        %v1038 = vld [vmem:[#allocation2] sm:$0xff]
        %v1039 = vld [vmem:[#allocation2 + $0x8] sm:$0xff]
        %v1040 = vld [vmem:[#allocation2 + $0x10] sm:$0xff]
        %v1041 = vld [vmem:[#allocation2 + $0x18] sm:$0xff]
        %v1042 = vld [vmem:[#allocation2 + $0x20] sm:$0xff]
        %v1043 = vld [vmem:[#allocation2 + $0x28] sm:$0xff]
        %v1044 = vld [vmem:[#allocation2 + $0x30] sm:$0xff]
        %v1045 = vld [vmem:[#allocation2 + $0x38] sm:$0xff]
        %v1046 = vld [vmem:[#allocation2 + $0x40] sm:$0xff]
        %v1047 = vld [vmem:[#allocation2 + $0x48] sm:$0xff]
        %v1048 = vld [vmem:[#allocation2 + $0x50] sm:$0xff]
        %v1049 = vld [vmem:[#allocation2 + $0x58] sm:$0xff]
        %v1050 = vld [vmem:[#allocation2 + $0x60] sm:$0xff]
        %v1051 = vld [vmem:[#allocation2 + $0x68] sm:$0xff]
        %v1052 = vld [vmem:[#allocation2 + $0x70] sm:$0xff]
        %v1053 = vld [vmem:[#allocation2 + $0x78] sm:$0xff]
        %v1054 = vld [vmem:[#allocation2 + $0x80] sm:$0xff]
        %v1055 = vld [vmem:[#allocation2 + $0x88] sm:$0xff]
        %v1056 = vld [vmem:[#allocation2 + $0x90] sm:$0xff]
        %v1057 = vld [vmem:[#allocation2 + $0x98] sm:$0xff]
        %v1058 = vld [vmem:[#allocation2 + $0xa0] sm:$0xff]
        %v1059 = vld [vmem:[#allocation2 + $0xa8] sm:$0xff]
        %v1060 = vld [vmem:[#allocation2 + $0xb0] sm:$0xff]
        %v1061 = vld [vmem:[#allocation2 + $0xb8] sm:$0xff]
        %v1062 = vld [vmem:[#allocation2 + $0xc0] sm:$0xff]
        %v1063 = vld [vmem:[#allocation2 + $0xc8] sm:$0xff]
        %v1064 = vld [vmem:[#allocation2 + $0xd0] sm:$0xff]
        %v1065 = vld [vmem:[#allocation2 + $0xd8] sm:$0xff]
        %v1066 = vld [vmem:[#allocation2 + $0xe0] sm:$0xff]
        %v1067 = vld [vmem:[#allocation2 + $0xe8] sm:$0xff]
        %v1068 = vld [vmem:[#allocation2 + $0xf0] sm:$0xff]
        %v1069 = vld [vmem:[#allocation2 + $0xf8] sm:$0xff]
        %v1071 = vsel %vm653, %v1030, 0
        %v1074 = vsel %vm653, %v1031, 0
        %v1077 = vsel %vm653, %v1032, 0
        %v1080 = vsel %vm653, %v1033, 0
        %1082 = vmatpush.msra.mxu0 0.0
        %1083 = vmatpush.msra.mxu0 0.0
        %1084 = vmatpush.msra.mxu0 0.0
        %1085 = vmatpush.msra.mxu0 0.0
        %1086 = vmatpush.msra.mxu0 0.0
        %1087 = vmatpush.msra.mxu0 0.0
        %1088 = vmatpush.msra.mxu0 0.0
        %1089 = vmatpush.msra.mxu0 0.0
        %1090 = vmatpush.msra.mxu0 0.0
        %1091 = vmatpush.msra.mxu0 0.0
        %1092 = vmatpush.msra.mxu0 0.0
        %1093 = vmatpush.msra.mxu0 0.0
        %1094 = vmatpush.msra.mxu0 %v1062
        %1095 = vmatpush.msra.mxu0 %v1054
        %1096 = vmatpush.msra.mxu0 %v1046
        %1097 = vmatpush.msra.mxu0 %v1038
        %1098 = vmatmul.f32.gmra.mxu0 %v1071
        %v1099 = vpop.f32.mrf.mxu0
        %v1100 = vadd.f32 0.0, %v1099
        %1101 = vmatmul.f32.gmra.mxu0 %v1074
        %v1102 = vpop.f32.mrf.mxu0
        %v1103 = vadd.f32 0.0, %v1102
        %1104 = vmatmul.f32.gmra.mxu0 %v1077
        %v1105 = vpop.f32.mrf.mxu0
        %v1106 = vadd.f32 0.0, %v1105
        %1107 = vmatmul.f32.gmra.mxu0 %v1080
        %v1108 = vpop.f32.mrf.mxu0
        %v1109 = vadd.f32 0.0, %v1108
        %1110 = vdwg.mxu0
        %1111 = vmatpush.msra.mxu0 0.0
        %1112 = vmatpush.msra.mxu0 0.0
        %1113 = vmatpush.msra.mxu0 0.0
        %1114 = vmatpush.msra.mxu0 0.0
        %1115 = vmatpush.msra.mxu0 0.0
        %1116 = vmatpush.msra.mxu0 0.0
        %1117 = vmatpush.msra.mxu0 0.0
        %1118 = vmatpush.msra.mxu0 0.0
        %1119 = vmatpush.msra.mxu0 0.0
        %1120 = vmatpush.msra.mxu0 0.0
        %1121 = vmatpush.msra.mxu0 0.0
        %1122 = vmatpush.msra.mxu0 0.0
        %1123 = vmatpush.msra.mxu0 %v1063
        %1124 = vmatpush.msra.mxu0 %v1055
        %1125 = vmatpush.msra.mxu0 %v1047
        %1126 = vmatpush.msra.mxu0 %v1039
        %1127 = vmatmul.f32.gmra.mxu0 %v1071
        %v1128 = vpop.f32.mrf.mxu0
        %v1129 = vadd.f32 0.0, %v1128
        %1130 = vmatmul.f32.gmra.mxu0 %v1074
        %v1131 = vpop.f32.mrf.mxu0
        %v1132 = vadd.f32 0.0, %v1131
        %1133 = vmatmul.f32.gmra.mxu0 %v1077
        %v1134 = vpop.f32.mrf.mxu0
        %v1135 = vadd.f32 0.0, %v1134
        %1136 = vmatmul.f32.gmra.mxu0 %v1080
        %v1137 = vpop.f32.mrf.mxu0
        %v1138 = vadd.f32 0.0, %v1137
        %1139 = vdwg.mxu0
        %1140 = vmatpush.msra.mxu0 0.0
        %1141 = vmatpush.msra.mxu0 0.0
        %1142 = vmatpush.msra.mxu0 0.0
        %1143 = vmatpush.msra.mxu0 0.0
        %1144 = vmatpush.msra.mxu0 0.0
        %1145 = vmatpush.msra.mxu0 0.0
        %1146 = vmatpush.msra.mxu0 0.0
        %1147 = vmatpush.msra.mxu0 0.0
        %1148 = vmatpush.msra.mxu0 0.0
        %1149 = vmatpush.msra.mxu0 0.0
        %1150 = vmatpush.msra.mxu0 0.0
        %1151 = vmatpush.msra.mxu0 0.0
        %1152 = vmatpush.msra.mxu0 %v1064
        %1153 = vmatpush.msra.mxu0 %v1056
        %1154 = vmatpush.msra.mxu0 %v1048
        %1155 = vmatpush.msra.mxu0 %v1040
        %1156 = vmatmul.f32.gmra.mxu0 %v1071
        %v1157 = vpop.f32.mrf.mxu0
        %v1158 = vadd.f32 0.0, %v1157
        %1159 = vmatmul.f32.gmra.mxu0 %v1074
        %v1160 = vpop.f32.mrf.mxu0
        %v1161 = vadd.f32 0.0, %v1160
        %1162 = vmatmul.f32.gmra.mxu0 %v1077
        %v1163 = vpop.f32.mrf.mxu0
        %v1164 = vadd.f32 0.0, %v1163
        %1165 = vmatmul.f32.gmra.mxu0 %v1080
        %v1166 = vpop.f32.mrf.mxu0
        %v1167 = vadd.f32 0.0, %v1166
        %1168 = vdwg.mxu0
        %1169 = vmatpush.msra.mxu0 0.0
        %1170 = vmatpush.msra.mxu0 0.0
        %1171 = vmatpush.msra.mxu0 0.0
        %1172 = vmatpush.msra.mxu0 0.0
        %1173 = vmatpush.msra.mxu0 0.0
        %1174 = vmatpush.msra.mxu0 0.0
        %1175 = vmatpush.msra.mxu0 0.0
        %1176 = vmatpush.msra.mxu0 0.0
        %1177 = vmatpush.msra.mxu0 0.0
        %1178 = vmatpush.msra.mxu0 0.0
        %1179 = vmatpush.msra.mxu0 0.0
        %1180 = vmatpush.msra.mxu0 0.0
        %1181 = vmatpush.msra.mxu0 %v1065
        %1182 = vmatpush.msra.mxu0 %v1057
        %1183 = vmatpush.msra.mxu0 %v1049
        %1184 = vmatpush.msra.mxu0 %v1041
        %1185 = vmatmul.f32.gmra.mxu0 %v1071
        %v1186 = vpop.f32.mrf.mxu0
        %v1187 = vadd.f32 0.0, %v1186
        %1188 = vmatmul.f32.gmra.mxu0 %v1074
        %v1189 = vpop.f32.mrf.mxu0
        %v1190 = vadd.f32 0.0, %v1189
        %1191 = vmatmul.f32.gmra.mxu0 %v1077
        %v1192 = vpop.f32.mrf.mxu0
        %v1193 = vadd.f32 0.0, %v1192
        %1194 = vmatmul.f32.gmra.mxu0 %v1080
        %v1195 = vpop.f32.mrf.mxu0
        %v1196 = vadd.f32 0.0, %v1195
        %1197 = vdwg.mxu0
        %1198 = vmatpush.msra.mxu0 0.0
        %1199 = vmatpush.msra.mxu0 0.0
        %1200 = vmatpush.msra.mxu0 0.0
        %1201 = vmatpush.msra.mxu0 0.0
        %1202 = vmatpush.msra.mxu0 0.0
        %1203 = vmatpush.msra.mxu0 0.0
        %1204 = vmatpush.msra.mxu0 0.0
        %1205 = vmatpush.msra.mxu0 0.0
        %1206 = vmatpush.msra.mxu0 0.0
        %1207 = vmatpush.msra.mxu0 0.0
        %1208 = vmatpush.msra.mxu0 0.0
        %1209 = vmatpush.msra.mxu0 0.0
        %1210 = vmatpush.msra.mxu0 %v1066
        %1211 = vmatpush.msra.mxu0 %v1058
        %1212 = vmatpush.msra.mxu0 %v1050
        %1213 = vmatpush.msra.mxu0 %v1042
        %1214 = vmatmul.f32.gmra.mxu0 %v1071
        %v1215 = vpop.f32.mrf.mxu0
        %v1216 = vadd.f32 0.0, %v1215
        %1217 = vmatmul.f32.gmra.mxu0 %v1074
        %v1218 = vpop.f32.mrf.mxu0
        %v1219 = vadd.f32 0.0, %v1218
        %1220 = vmatmul.f32.gmra.mxu0 %v1077
        %v1221 = vpop.f32.mrf.mxu0
        %v1222 = vadd.f32 0.0, %v1221
        %1223 = vmatmul.f32.gmra.mxu0 %v1080
        %v1224 = vpop.f32.mrf.mxu0
        %v1225 = vadd.f32 0.0, %v1224
        %1226 = vdwg.mxu0
        %1227 = vmatpush.msra.mxu0 0.0
        %1228 = vmatpush.msra.mxu0 0.0
        %1229 = vmatpush.msra.mxu0 0.0
        %1230 = vmatpush.msra.mxu0 0.0
        %1231 = vmatpush.msra.mxu0 0.0
        %1232 = vmatpush.msra.mxu0 0.0
        %1233 = vmatpush.msra.mxu0 0.0
        %1234 = vmatpush.msra.mxu0 0.0
        %1235 = vmatpush.msra.mxu0 0.0
        %1236 = vmatpush.msra.mxu0 0.0
        %1237 = vmatpush.msra.mxu0 0.0
        %1238 = vmatpush.msra.mxu0 0.0
        %1239 = vmatpush.msra.mxu0 %v1067
        %1240 = vmatpush.msra.mxu0 %v1059
        %1241 = vmatpush.msra.mxu0 %v1051
        %1242 = vmatpush.msra.mxu0 %v1043
        %1243 = vmatmul.f32.gmra.mxu0 %v1071
        %v1244 = vpop.f32.mrf.mxu0
        %v1245 = vadd.f32 0.0, %v1244
        %1246 = vmatmul.f32.gmra.mxu0 %v1074
        %v1247 = vpop.f32.mrf.mxu0
        %v1248 = vadd.f32 0.0, %v1247
        %1249 = vmatmul.f32.gmra.mxu0 %v1077
        %v1250 = vpop.f32.mrf.mxu0
        %v1251 = vadd.f32 0.0, %v1250
        %1252 = vmatmul.f32.gmra.mxu0 %v1080
        %v1253 = vpop.f32.mrf.mxu0
        %v1254 = vadd.f32 0.0, %v1253
        %1255 = vdwg.mxu0
        %1256 = vmatpush.msra.mxu0 0.0
        %1257 = vmatpush.msra.mxu0 0.0
        %1258 = vmatpush.msra.mxu0 0.0
        %1259 = vmatpush.msra.mxu0 0.0
        %1260 = vmatpush.msra.mxu0 0.0
        %1261 = vmatpush.msra.mxu0 0.0
        %1262 = vmatpush.msra.mxu0 0.0
        %1263 = vmatpush.msra.mxu0 0.0
        %1264 = vmatpush.msra.mxu0 0.0
        %1265 = vmatpush.msra.mxu0 0.0
        %1266 = vmatpush.msra.mxu0 0.0
        %1267 = vmatpush.msra.mxu0 0.0
        %1268 = vmatpush.msra.mxu0 %v1068
        %1269 = vmatpush.msra.mxu0 %v1060
        %1270 = vmatpush.msra.mxu0 %v1052
        %1271 = vmatpush.msra.mxu0 %v1044
        %1272 = vmatmul.f32.gmra.mxu0 %v1071
        %v1273 = vpop.f32.mrf.mxu0
        %v1274 = vadd.f32 0.0, %v1273
        %1275 = vmatmul.f32.gmra.mxu0 %v1074
        %v1276 = vpop.f32.mrf.mxu0
        %v1277 = vadd.f32 0.0, %v1276
        %1278 = vmatmul.f32.gmra.mxu0 %v1077
        %v1279 = vpop.f32.mrf.mxu0
        %v1280 = vadd.f32 0.0, %v1279
        %1281 = vmatmul.f32.gmra.mxu0 %v1080
        %v1282 = vpop.f32.mrf.mxu0
        %v1283 = vadd.f32 0.0, %v1282
        %1284 = vdwg.mxu0
        %1285 = vmatpush.msra.mxu0 0.0
        %1286 = vmatpush.msra.mxu0 0.0
        %1287 = vmatpush.msra.mxu0 0.0
        %1288 = vmatpush.msra.mxu0 0.0
        %1289 = vmatpush.msra.mxu0 0.0
        %1290 = vmatpush.msra.mxu0 0.0
        %1291 = vmatpush.msra.mxu0 0.0
        %1292 = vmatpush.msra.mxu0 0.0
        %1293 = vmatpush.msra.mxu0 0.0
        %1294 = vmatpush.msra.mxu0 0.0
        %1295 = vmatpush.msra.mxu0 0.0
        %1296 = vmatpush.msra.mxu0 0.0
        %1297 = vmatpush.msra.mxu0 %v1069
        %1298 = vmatpush.msra.mxu0 %v1061
        %1299 = vmatpush.msra.mxu0 %v1053
        %1300 = vmatpush.msra.mxu0 %v1045
        %1301 = vmatmul.f32.gmra.mxu0 %v1071
        %v1302 = vpop.f32.mrf.mxu0
        %v1303 = vadd.f32 0.0, %v1302
        %1304 = vmatmul.f32.gmra.mxu0 %v1074
        %v1305 = vpop.f32.mrf.mxu0
        %v1306 = vadd.f32 0.0, %v1305
        %1307 = vmatmul.f32.gmra.mxu0 %v1077
        %v1308 = vpop.f32.mrf.mxu0
        %v1309 = vadd.f32 0.0, %v1308
        %1310 = vmatmul.f32.gmra.mxu0 %v1080
        %v1311 = vpop.f32.mrf.mxu0
        %v1312 = vadd.f32 0.0, %v1311
        %1313 = vdwg.mxu0
        %1315 = vset.pattern.permute.xlu0 0
        %1316 = vperm.xlu0 %1315, %v1034
        %v1317 = vpop.permute.xlu0 %1316
        %1320 = vset.pattern.permute.xlu0 0
        %1321 = vperm.xlu0 %1320, %v1035
        %v1322 = vpop.permute.xlu0 %1321
        %1325 = vset.pattern.permute.xlu0 0
        %1326 = vperm.xlu0 %1325, %v1036
        %v1327 = vpop.permute.xlu0 %1326
        %1330 = vset.pattern.permute.xlu0 0
        %1331 = vperm.xlu0 %1330, %v1037
        %v1332 = vpop.permute.xlu0 %1331
        %v1334 = vadd.f32 %v1100, %v1317
        %v1335 = vadd.f32 %v1129, %v1317
        %v1336 = vadd.f32 %v1158, %v1317
        %v1337 = vadd.f32 %v1187, %v1317
        %v1338 = vadd.f32 %v1103, %v1322
        %v1339 = vadd.f32 %v1132, %v1322
        %v1340 = vadd.f32 %v1161, %v1322
        %v1341 = vadd.f32 %v1190, %v1322
        %v1342 = vadd.f32 %v1106, %v1327
        %v1343 = vadd.f32 %v1135, %v1327
        %v1344 = vadd.f32 %v1164, %v1327
        %v1345 = vadd.f32 %v1193, %v1327
        %v1346 = vadd.f32 %v1109, %v1332
        %v1347 = vadd.f32 %v1138, %v1332
        %v1348 = vadd.f32 %v1167, %v1332
        %v1349 = vadd.f32 %v1196, %v1332
        %v1350 = vtanh.pop %v1334
        %v1351 = vtanh.pop %v1335
        %v1352 = vtanh.pop %v1336
        %v1353 = vtanh.pop %v1337
        %v1354 = vtanh.pop %v1338
        %v1355 = vtanh.pop %v1339
        %v1356 = vtanh.pop %v1340
        %v1357 = vtanh.pop %v1341
        %v1358 = vtanh.pop %v1342
        %v1359 = vtanh.pop %v1343
        %v1360 = vtanh.pop %v1344
        %v1361 = vtanh.pop %v1345
        %v1362 = vtanh.pop %v1346
        %v1363 = vtanh.pop %v1347
        %v1364 = vtanh.pop %v1348
        %v1365 = vtanh.pop %v1349
        %1366 = vst [vmem:[#allocation2] sm:$0xff] %v1350
        %1367 = vst [vmem:[#allocation2 + $0x8] sm:$0xff] %v1351
        %1368 = vst [vmem:[#allocation2 + $0x10] sm:$0xff] %v1352
        %1369 = vst [vmem:[#allocation2 + $0x18] sm:$0xff] %v1353
        %1370 = vst [vmem:[#allocation2 + $0x40] sm:$0xff] %v1354
        %1371 = vst [vmem:[#allocation2 + $0x48] sm:$0xff] %v1355
        %1372 = vst [vmem:[#allocation2 + $0x50] sm:$0xff] %v1356
        %1373 = vst [vmem:[#allocation2 + $0x58] sm:$0xff] %v1357
        %1374 = vst [vmem:[#allocation2 + $0x80] sm:$0xff] %v1358
        %1375 = vst [vmem:[#allocation2 + $0x88] sm:$0xff] %v1359
        %1376 = vst [vmem:[#allocation2 + $0x90] sm:$0xff] %v1360
        %1377 = vst [vmem:[#allocation2 + $0x98] sm:$0xff] %v1361
        %1378 = vst [vmem:[#allocation2 + $0xc0] sm:$0xff] %v1362
        %1379 = vst [vmem:[#allocation2 + $0xc8] sm:$0xff] %v1363
        %1380 = vst [vmem:[#allocation2 + $0xd0] sm:$0xff] %v1364
        %1381 = vst [vmem:[#allocation2 + $0xd8] sm:$0xff] %v1365
        %v1382 = vmul.f32 %v1350, %v1350
        %v1383 = vmul.f32 %v1351, %v1351
        %v1384 = vmul.f32 %v1352, %v1352
        %v1385 = vmul.f32 %v1353, %v1353
        %v1386 = vmul.f32 %v1354, %v1354
        %v1387 = vmul.f32 %v1355, %v1355
        %v1388 = vmul.f32 %v1356, %v1356
        %v1389 = vmul.f32 %v1357, %v1357
        %v1390 = vmul.f32 %v1358, %v1358
        %v1391 = vmul.f32 %v1359, %v1359
        %v1392 = vmul.f32 %v1360, %v1360
        %v1393 = vmul.f32 %v1361, %v1361
        %v1394 = vmul.f32 %v1362, %v1362
        %v1395 = vmul.f32 %v1363, %v1363
        %v1396 = vmul.f32 %v1364, %v1364
        %v1397 = vmul.f32 %v1365, %v1365
        %v1398 = vsub.f32 1.0, %v1382
        %v1399 = vsub.f32 1.0, %v1383
        %v1400 = vsub.f32 1.0, %v1384
        %v1401 = vsub.f32 1.0, %v1385
        %v1402 = vsub.f32 1.0, %v1386
        %v1403 = vsub.f32 1.0, %v1387
        %v1404 = vsub.f32 1.0, %v1388
        %v1405 = vsub.f32 1.0, %v1389
        %v1406 = vsub.f32 1.0, %v1390
        %v1407 = vsub.f32 1.0, %v1391
        %v1408 = vsub.f32 1.0, %v1392
        %v1409 = vsub.f32 1.0, %v1393
        %v1410 = vsub.f32 1.0, %v1394
        %v1411 = vsub.f32 1.0, %v1395
        %v1412 = vsub.f32 1.0, %v1396
        %v1413 = vsub.f32 1.0, %v1397
        %v1414 = vmul.f32 %v1216, %v1398
        %v1415 = vmul.f32 %v1245, %v1399
        %v1416 = vmul.f32 %v1274, %v1400
        %v1417 = vmul.f32 %v1303, %v1401
        %v1418 = vmul.f32 %v1219, %v1402
        %v1419 = vmul.f32 %v1248, %v1403
        %v1420 = vmul.f32 %v1277, %v1404
        %v1421 = vmul.f32 %v1306, %v1405
        %v1422 = vmul.f32 %v1222, %v1406
        %v1423 = vmul.f32 %v1251, %v1407
        %v1424 = vmul.f32 %v1280, %v1408
        %v1425 = vmul.f32 %v1309, %v1409
        %v1426 = vmul.f32 %v1225, %v1410
        %v1427 = vmul.f32 %v1254, %v1411
        %v1428 = vmul.f32 %v1283, %v1412
        %v1429 = vmul.f32 %v1312, %v1413
        %1430 = vst [vmem:[#allocation2 + $0x20] sm:$0xff] %v1414
        %1431 = vst [vmem:[#allocation2 + $0x28] sm:$0xff] %v1415
        %1432 = vst [vmem:[#allocation2 + $0x30] sm:$0xff] %v1416
        %1433 = vst [vmem:[#allocation2 + $0x38] sm:$0xff] %v1417
        %1434 = vst [vmem:[#allocation2 + $0x60] sm:$0xff] %v1418
        %1435 = vst [vmem:[#allocation2 + $0x68] sm:$0xff] %v1419
        %1436 = vst [vmem:[#allocation2 + $0x70] sm:$0xff] %v1420
        %1437 = vst [vmem:[#allocation2 + $0x78] sm:$0xff] %v1421
        %1438 = vst [vmem:[#allocation2 + $0xa0] sm:$0xff] %v1422
        %1439 = vst [vmem:[#allocation2 + $0xa8] sm:$0xff] %v1423
        %1440 = vst [vmem:[#allocation2 + $0xb0] sm:$0xff] %v1424
        %1441 = vst [vmem:[#allocation2 + $0xb8] sm:$0xff] %v1425
        %1442 = vst [vmem:[#allocation2 + $0xe0] sm:$0xff] %v1426
        %1443 = vst [vmem:[#allocation2 + $0xe8] sm:$0xff] %v1427
        %1444 = vst [vmem:[#allocation2 + $0xf0] sm:$0xff] %v1428
        %1445 = vst [vmem:[#allocation2 + $0xf8] sm:$0xff] %v1429
        %v1446 = vld [vmem:[%s6] sm:$0x3]
        %v1447 = vld [vmem:[%s2 + $0x60] sm:$0x3]
        %v1448 = vld [vmem:[#allocation2] sm:$0xff]
        %v1449 = vld [vmem:[#allocation2 + $0x8] sm:$0xff]
        %v1450 = vld [vmem:[#allocation2 + $0x10] sm:$0xff]
        %v1451 = vld [vmem:[#allocation2 + $0x18] sm:$0xff]
        %v1452 = vld [vmem:[#allocation2 + $0x20] sm:$0xff]
        %v1453 = vld [vmem:[#allocation2 + $0x28] sm:$0xff]
        %v1454 = vld [vmem:[#allocation2 + $0x30] sm:$0xff]
        %v1455 = vld [vmem:[#allocation2 + $0x38] sm:$0xff]
        %v1456 = vld [vmem:[#allocation2 + $0x40] sm:$0xff]
        %v1457 = vld [vmem:[#allocation2 + $0x48] sm:$0xff]
        %v1458 = vld [vmem:[#allocation2 + $0x50] sm:$0xff]
        %v1459 = vld [vmem:[#allocation2 + $0x58] sm:$0xff]
        %v1460 = vld [vmem:[#allocation2 + $0x60] sm:$0xff]
        %v1461 = vld [vmem:[#allocation2 + $0x68] sm:$0xff]
        %v1462 = vld [vmem:[#allocation2 + $0x70] sm:$0xff]
        %v1463 = vld [vmem:[#allocation2 + $0x78] sm:$0xff]
        %v1464 = vld [vmem:[#allocation2 + $0x80] sm:$0xff]
        %v1465 = vld [vmem:[#allocation2 + $0x88] sm:$0xff]
        %v1466 = vld [vmem:[#allocation2 + $0x90] sm:$0xff]
        %v1467 = vld [vmem:[#allocation2 + $0x98] sm:$0xff]
        %v1468 = vld [vmem:[#allocation2 + $0xa0] sm:$0xff]
        %v1469 = vld [vmem:[#allocation2 + $0xa8] sm:$0xff]
        %v1470 = vld [vmem:[#allocation2 + $0xb0] sm:$0xff]
        %v1471 = vld [vmem:[#allocation2 + $0xb8] sm:$0xff]
        %v1472 = vld [vmem:[#allocation2 + $0xc0] sm:$0xff]
        %v1473 = vld [vmem:[#allocation2 + $0xc8] sm:$0xff]
        %v1474 = vld [vmem:[#allocation2 + $0xd0] sm:$0xff]
        %v1475 = vld [vmem:[#allocation2 + $0xd8] sm:$0xff]
        %v1476 = vld [vmem:[#allocation2 + $0xe0] sm:$0xff]
        %v1477 = vld [vmem:[#allocation2 + $0xe8] sm:$0xff]
        %v1478 = vld [vmem:[#allocation2 + $0xf0] sm:$0xff]
        %v1479 = vld [vmem:[#allocation2 + $0xf8] sm:$0xff]
        %v1480 = vlaneseq
        %v1481 = vand.u32 %v1480, 127
        %v1482 = vadd.s32 %v1481, 128
        %v1483 = vadd.s32 %v1481, 256
        %v1484 = vadd.s32 %v1481, 384
        %v1485 = vadd.s32 %v1481, 512
        %v1486 = vadd.s32 %v1481, 640
        %v1487 = vadd.s32 %v1481, 768
        %v1488 = vadd.s32 %v1481, 896
        %vm1489 = vcmp.lt.s32.totalorder %v1481, 512
        %vm1490 = vcmp.lt.s32.totalorder %v1482, 512
        %vm1491 = vcmp.lt.s32.totalorder %v1483, 512
        %vm1492 = vcmp.lt.s32.totalorder %v1484, 512
        %vm1493 = vcmp.lt.s32.totalorder %v1485, 512
        %vm1494 = vcmp.lt.s32.totalorder %v1486, 512
        %vm1495 = vcmp.lt.s32.totalorder %v1487, 512
        %vm1496 = vcmp.lt.s32.totalorder %v1488, 512
        %v1497 = vsel %vm1489, 1, 0
        %v1498 = vsel %vm1490, 1, 0
        %v1499 = vsel %vm1491, 1, 0
        %v1500 = vsel %vm1492, 1, 0
        %v1501 = vsel %vm1493, 1, 0
        %v1502 = vsel %vm1494, 1, 0
        %v1503 = vsel %vm1495, 1, 0
        %v1504 = vsel %vm1496, 1, 0
        %v1505 = vcvt.s32.f32 %v1497
        %v1506 = vcvt.s32.f32 %v1498
        %v1507 = vcvt.s32.f32 %v1499
        %v1508 = vcvt.s32.f32 %v1500
        %v1509 = vcvt.s32.f32 %v1501
        %v1510 = vcvt.s32.f32 %v1502
        %v1511 = vcvt.s32.f32 %v1503
        %v1512 = vcvt.s32.f32 %v1504
        %1514 = vset.pattern.permute.xlu0 0
        %1515 = vperm.xlu0 %1514, %v1447
        %v1516 = vpop.permute.xlu0 %1515
        %v1518 = vmul.f32 %v1516, %v1505
        %v1519 = vmul.f32 %v1516, %v1506
        %v1520 = vmul.f32 %v1516, %v1507
        %v1521 = vmul.f32 %v1516, %v1508
        %v1522 = vmul.f32 %v1516, %v1509
        %v1523 = vmul.f32 %v1516, %v1510
        %v1524 = vmul.f32 %v1516, %v1511
        %v1525 = vmul.f32 %v1516, %v1512
        %v1527 = vsel %vm653, %v1446, 0
        %1529 = vmatpush.msra.mxu0 0.0
        %1530 = vmatpush.msra.mxu0 0.0
        %1531 = vmatpush.msra.mxu0 0.0
        %1532 = vmatpush.msra.mxu0 0.0
        %1533 = vmatpush.msra.mxu0 0.0
        %1534 = vmatpush.msra.mxu0 0.0
        %1535 = vmatpush.msra.mxu0 0.0
        %1536 = vmatpush.msra.mxu0 0.0
        %1537 = vmatpush.msra.mxu0 0.0
        %1538 = vmatpush.msra.mxu0 0.0
        %1539 = vmatpush.msra.mxu0 0.0
        %1540 = vmatpush.msra.mxu0 0.0
        %1541 = vmatpush.msra.mxu0 %v1472
        %1542 = vmatpush.msra.mxu0 %v1464
        %1543 = vmatpush.msra.mxu0 %v1456
        %1544 = vmatpush.msra.mxu0 %v1448
        %1545 = vmatmul.f32.gmra.mxu0 %v1527
        %v1546 = vpop.f32.mrf.mxu0
        %v1547 = vadd.f32 %v1518, %v1546
        %1548 = vdwg.mxu0
        %1549 = vmatpush.msra.mxu0 0.0
        %1550 = vmatpush.msra.mxu0 0.0
        %1551 = vmatpush.msra.mxu0 0.0
        %1552 = vmatpush.msra.mxu0 0.0
        %1553 = vmatpush.msra.mxu0 0.0
        %1554 = vmatpush.msra.mxu0 0.0
        %1555 = vmatpush.msra.mxu0 0.0
        %1556 = vmatpush.msra.mxu0 0.0
        %1557 = vmatpush.msra.mxu0 0.0
        %1558 = vmatpush.msra.mxu0 0.0
        %1559 = vmatpush.msra.mxu0 0.0
        %1560 = vmatpush.msra.mxu0 0.0
        %1561 = vmatpush.msra.mxu0 %v1473
        %1562 = vmatpush.msra.mxu0 %v1465
        %1563 = vmatpush.msra.mxu0 %v1457
        %1564 = vmatpush.msra.mxu0 %v1449
        %1565 = vmatmul.f32.gmra.mxu0 %v1527
        %v1566 = vpop.f32.mrf.mxu0
        %v1567 = vadd.f32 %v1519, %v1566
        %1568 = vdwg.mxu0
        %1569 = vmatpush.msra.mxu0 0.0
        %1570 = vmatpush.msra.mxu0 0.0
        %1571 = vmatpush.msra.mxu0 0.0
        %1572 = vmatpush.msra.mxu0 0.0
        %1573 = vmatpush.msra.mxu0 0.0
        %1574 = vmatpush.msra.mxu0 0.0
        %1575 = vmatpush.msra.mxu0 0.0
        %1576 = vmatpush.msra.mxu0 0.0
        %1577 = vmatpush.msra.mxu0 0.0
        %1578 = vmatpush.msra.mxu0 0.0
        %1579 = vmatpush.msra.mxu0 0.0
        %1580 = vmatpush.msra.mxu0 0.0
        %1581 = vmatpush.msra.mxu0 %v1474
        %1582 = vmatpush.msra.mxu0 %v1466
        %1583 = vmatpush.msra.mxu0 %v1458
        %1584 = vmatpush.msra.mxu0 %v1450
        %1585 = vmatmul.f32.gmra.mxu0 %v1527
        %v1586 = vpop.f32.mrf.mxu0
        %v1587 = vadd.f32 %v1520, %v1586
        %1588 = vdwg.mxu0
        %1589 = vmatpush.msra.mxu0 0.0
        %1590 = vmatpush.msra.mxu0 0.0
        %1591 = vmatpush.msra.mxu0 0.0
        %1592 = vmatpush.msra.mxu0 0.0
        %1593 = vmatpush.msra.mxu0 0.0
        %1594 = vmatpush.msra.mxu0 0.0
        %1595 = vmatpush.msra.mxu0 0.0
        %1596 = vmatpush.msra.mxu0 0.0
        %1597 = vmatpush.msra.mxu0 0.0
        %1598 = vmatpush.msra.mxu0 0.0
        %1599 = vmatpush.msra.mxu0 0.0
        %1600 = vmatpush.msra.mxu0 0.0
        %1601 = vmatpush.msra.mxu0 %v1475
        %1602 = vmatpush.msra.mxu0 %v1467
        %1603 = vmatpush.msra.mxu0 %v1459
        %1604 = vmatpush.msra.mxu0 %v1451
        %1605 = vmatmul.f32.gmra.mxu0 %v1527
        %v1606 = vpop.f32.mrf.mxu0
        %v1607 = vadd.f32 %v1521, %v1606
        %1608 = vdwg.mxu0
        %1609 = vmatpush.msra.mxu0 0.0
        %1610 = vmatpush.msra.mxu0 0.0
        %1611 = vmatpush.msra.mxu0 0.0
        %1612 = vmatpush.msra.mxu0 0.0
        %1613 = vmatpush.msra.mxu0 0.0
        %1614 = vmatpush.msra.mxu0 0.0
        %1615 = vmatpush.msra.mxu0 0.0
        %1616 = vmatpush.msra.mxu0 0.0
        %1617 = vmatpush.msra.mxu0 0.0
        %1618 = vmatpush.msra.mxu0 0.0
        %1619 = vmatpush.msra.mxu0 0.0
        %1620 = vmatpush.msra.mxu0 0.0
        %1621 = vmatpush.msra.mxu0 %v1476
        %1622 = vmatpush.msra.mxu0 %v1468
        %1623 = vmatpush.msra.mxu0 %v1460
        %1624 = vmatpush.msra.mxu0 %v1452
        %1625 = vmatmul.f32.gmra.mxu0 %v1527
        %v1626 = vpop.f32.mrf.mxu0
        %v1627 = vadd.f32 %v1522, %v1626
        %1628 = vdwg.mxu0
        %1629 = vmatpush.msra.mxu0 0.0
        %1630 = vmatpush.msra.mxu0 0.0
        %1631 = vmatpush.msra.mxu0 0.0
        %1632 = vmatpush.msra.mxu0 0.0
        %1633 = vmatpush.msra.mxu0 0.0
        %1634 = vmatpush.msra.mxu0 0.0
        %1635 = vmatpush.msra.mxu0 0.0
        %1636 = vmatpush.msra.mxu0 0.0
        %1637 = vmatpush.msra.mxu0 0.0
        %1638 = vmatpush.msra.mxu0 0.0
        %1639 = vmatpush.msra.mxu0 0.0
        %1640 = vmatpush.msra.mxu0 0.0
        %1641 = vmatpush.msra.mxu0 %v1477
        %1642 = vmatpush.msra.mxu0 %v1469
        %1643 = vmatpush.msra.mxu0 %v1461
        %1644 = vmatpush.msra.mxu0 %v1453
        %1645 = vmatmul.f32.gmra.mxu0 %v1527
        %v1646 = vpop.f32.mrf.mxu0
        %v1647 = vadd.f32 %v1523, %v1646
        %1648 = vdwg.mxu0
        %1649 = vmatpush.msra.mxu0 0.0
        %1650 = vmatpush.msra.mxu0 0.0
        %1651 = vmatpush.msra.mxu0 0.0
        %1652 = vmatpush.msra.mxu0 0.0
        %1653 = vmatpush.msra.mxu0 0.0
        %1654 = vmatpush.msra.mxu0 0.0
        %1655 = vmatpush.msra.mxu0 0.0
        %1656 = vmatpush.msra.mxu0 0.0
        %1657 = vmatpush.msra.mxu0 0.0
        %1658 = vmatpush.msra.mxu0 0.0
        %1659 = vmatpush.msra.mxu0 0.0
        %1660 = vmatpush.msra.mxu0 0.0
        %1661 = vmatpush.msra.mxu0 %v1478
        %1662 = vmatpush.msra.mxu0 %v1470
        %1663 = vmatpush.msra.mxu0 %v1462
        %1664 = vmatpush.msra.mxu0 %v1454
        %1665 = vmatmul.f32.gmra.mxu0 %v1527
        %v1666 = vpop.f32.mrf.mxu0
        %v1667 = vadd.f32 %v1524, %v1666
        %1668 = vdwg.mxu0
        %1669 = vmatpush.msra.mxu0 0.0
        %1670 = vmatpush.msra.mxu0 0.0
        %1671 = vmatpush.msra.mxu0 0.0
        %1672 = vmatpush.msra.mxu0 0.0
        %1673 = vmatpush.msra.mxu0 0.0
        %1674 = vmatpush.msra.mxu0 0.0
        %1675 = vmatpush.msra.mxu0 0.0
        %1676 = vmatpush.msra.mxu0 0.0
        %1677 = vmatpush.msra.mxu0 0.0
        %1678 = vmatpush.msra.mxu0 0.0
        %1679 = vmatpush.msra.mxu0 0.0
        %1680 = vmatpush.msra.mxu0 0.0
        %1681 = vmatpush.msra.mxu0 %v1479
        %1682 = vmatpush.msra.mxu0 %v1471
        %1683 = vmatpush.msra.mxu0 %v1463
        %1684 = vmatpush.msra.mxu0 %v1455
        %1685 = vmatmul.f32.gmra.mxu0 %v1527
        %v1686 = vpop.f32.mrf.mxu0
        %v1687 = vadd.f32 %v1525, %v1686
        %1688 = vdwg.mxu0
        %v1697 = vrot.slane %v1567, 6
        %v1698 = vrot.slane %v1587, 4
        %v1699 = vrot.slane %v1607, 2
        %v1700 = vrot.slane %v1647, 6
        %v1701 = vrot.slane %v1667, 4
        %v1702 = vrot.slane %v1687, 2
        %vm1703 = vcmask 1041408
        %v1704 = vsel %vm1703, %v1547, %v1697
        %vm1705 = vcmask 1045508
        %v1706 = vsel %vm1705, %v1698, %v1699
        %vm1707 = vcmask 1043456
        %v1708 = vsel %vm1707, %v1704, %v1706
        %v1709 = vsel %vm1703, %v1627, %v1700
        %v1710 = vsel %vm1705, %v1701, %v1702
        %v1711 = vsel %vm1707, %v1709, %v1710
        %1714 = vst [vmem:[%s286] sm:$0xff] %v1708
        %1715 = vst [vmem:[%s286 + $0x8] sm:$0xff] %v1711
        %s1716 = sand.u32 %s182, 1
        %s1717 = scalar_lea.sflag [#allocation4], %s1716
        %s1718 = sand.u32 %s182, 1
        %s1719 = smul.addr %s1718, 16
        %s1720 = scalar_lea.vmem [#allocation6], %s1719
        // Predicated region
        $region53: #{tpu_custom_call.1} parent=47 // pred_check
          %p1721 = pneg %p192
        $region54: #{tpu_custom_call.1} parent=47 // pred_check_branch
          %1723 = sbr.rel (%p1721) target = $region56
        $region55: #{tpu_custom_call.1} parent=47 // pred_region
          %s1724 = smul.u32 8, %s22
          %1726 = vsyncadd %s1717, 0
          %s1727 = smul.addr %s1724, 2
          %s1728 = scalar_lea.hbm %s7, %s1727
          %s1730 = sshll.u32 %s1720, 4
          %s1731 = int_to_ptr.vmem [resolvable:$true] %s1730
          %s1732 = sshll.u32 %s1728, 4
          %s1733 = int_to_ptr.hbm [resolvable:$true] %s1732
          %1735 = dma.vmem_to_hbm [thread:$0]  %s1731, 256, %s1733, %s1717
        $region56: #{tpu_custom_call.1} parent=47 // pred_fallthru
          _
      $region48: #{tpu_custom_call.1} parent=5 // pred_fallthru
        _
      %p1736 = scmp.le.s32.totalorder 2, %s17
      // Predicated region
      $region57: #{tpu_custom_call.1} parent=5 // pred_check
        %p1737 = pneg %p1736
      $region58: #{tpu_custom_call.1} parent=5 // pred_check_branch
        %1739 = sbr.rel (%p1737) target = $region60
      $region59: #{tpu_custom_call.1} parent=5 // pred_region
        %s1740 = ssub.s32 %s17, 2
        // Predicated region
        $region61: #{tpu_custom_call.1} parent=59 // pred_check
          %p1741 = pneg %p198
        $region62: #{tpu_custom_call.1} parent=59 // pred_check_branch
          %1743 = sbr.rel (%p1741) target = $region64
        $region63: #{tpu_custom_call.1} parent=59 // pred_region
          %s1744 = sand.u32 %s183, 1
          %s1745 = scalar_lea.sflag [#allocation4], %s1744
          %s1746 = sand.u32 %s183, 1
          %s1747 = smul.addr %s1746, 16
          %s1748 = scalar_lea.vmem [#allocation6], %s1747
          %1750 = dma.done %s1745, 256
        $region64: #{tpu_custom_call.1} parent=59 // pred_fallthru
          _
      $region60: #{tpu_custom_call.1} parent=5 // pred_fallthru
        _
    $region6: #{tpu_custom_call.1} parent=1 // loop_footer
      %s21 = sadd.s32 1, %s17
    $region7: #{tpu_custom_call.1} parent=1 // loop_footer_branch
      %16 = sbr.rel target = $region3
    $region8: #{tpu_custom_call.1} parent=1 // loop_exit
      _
    %1751 = vsyncpa [#allocation4], 1
    %s1752 = scalar_lea.sflag [#allocation4], 1
    %1753 = vsyncpa %s1752, 1
    %1754 = vsyncpa [#allocation5], 1
    %s1755 = scalar_lea.sflag [#allocation5], 1
    %1756 = vsyncpa %s1755, 1

</llo_original>
